<compile_context>
chip_gen: v5e
topology: v5e:2x2
jax: 0.10.0
libtpu: 0.0.40
codegen_flags: <defaults>
</compile_context>

<pallas_src>
import functools
import math

import jax
import jax.numpy as jnp
from jax import lax
from jax.experimental import pallas as pl
from jax.experimental.pallas import tpu as pltpu


# dtype for inter-layer activations / matmul operands.  Accumulation and the
# BatchNorm statistics are always f32.  Set to jnp.float32 for full precision.
ACT_DTYPE = jnp.bfloat16

_BN_EPS = 1e-5


def _round_up(x, m):
    return (x + m - 1) // m * m


def _pick_tile_h(height, width):
    """Output rows per grid step: divides H, keeps <= ~2048 output pixels."""
    cap = max(1, min(height, 8, 2048 // max(width, 1)))
    for th in range(cap, 0, -1):
        if height % th == 0:
            return th
    return 1


# ----------------------------------------------------------------------------
# Pallas kernels: 3x3 same-pad conv (no bias) on one (TH+2, W+2, Cin) row tile,
# expressed as a single (TH*W, 9*Cin) @ (9*Cin, Cout) MXU matmul.  The taps are
# built in-kernel from shifted slices of the VMEM block.  The stats variant
# additionally emits the per-tile channel sum / sum-of-squares of the conv
# output (for training-mode BatchNorm).
# ----------------------------------------------------------------------------
def _conv_taps_matmul(xb_ref, w_ref, tile_h, width):
    cin = xb_ref.shape[-1]
    xb = xb_ref[...]                                        # (TH+2, W+2, Cin)
    taps = [xb[dy:dy + tile_h, dx:dx + width, :]            # 9 x (TH, W, Cin)
            for dy in range(3) for dx in range(3)]
    patches = jnp.concatenate(taps, axis=-1)                # (TH, W, 9*Cin)
    patches = patches.reshape(tile_h * width, 9 * cin)      # (TH*W, 9*Cin)
    # One MXU matmul (K = 9*Cin), f32 accumulation.
    return jnp.dot(patches, w_ref[...], preferred_element_type=jnp.float32)


def _conv_kernel(xb_ref, w_ref, out_ref, *, tile_h, width):
    acc = _conv_taps_matmul(xb_ref, w_ref, tile_h, width)
    out_ref[...] = acc.astype(out_ref.dtype)


def _conv_stats_kernel(xb_ref, w_ref, out_ref, stats_ref, *, tile_h, width):
    acc = _conv_taps_matmul(xb_ref, w_ref, tile_h, width)
    cout = acc.shape[-1]
    s1 = jnp.sum(acc, axis=0, keepdims=True)                # (1, Cout) f32
    s2 = jnp.sum(acc * acc, axis=0, keepdims=True)          # (1, Cout) f32
    stats_ref[0:1, :] = s1
    stats_ref[1:2, :] = s2
    stats_ref[2:8, :] = jnp.zeros((6, cout), jnp.float32)
    out_ref[...] = acc.astype(out_ref.dtype)


def _conv3x3_pallas(xb, w_flat, *, tile_h, width, out_dtype, compute_stats):
    """xb: (G, TH+2, W+2, Cp) activation row tiles; w_flat: (9*Cp, Cout)."""
    g = xb.shape[0]
    cp = xb.shape[-1]
    k, cout = w_flat.shape
    tm = tile_h * width

    in_specs = [
        # One halo'd row tile per grid step (leading dim squeezed out).
        pl.BlockSpec((None, tile_h + 2, width + 2, cp),
                     lambda i: (i, 0, 0, 0)),
        # Weights are grid-invariant (fetched once, kept resident in VMEM).
        pl.BlockSpec((k, cout), lambda i: (0, 0)),
    ]
    out_spec = pl.BlockSpec((None, tm, cout), lambda i: (i, 0, 0))
    out_shape = jax.ShapeDtypeStruct((g, tm, cout), out_dtype)

    act_bytes = xb.size * xb.dtype.itemsize
    w_bytes = w_flat.size * w_flat.dtype.itemsize
    out_bytes = g * tm * cout * jnp.dtype(out_dtype).itemsize
    cost = pl.CostEstimate(flops=2 * g * tm * k * cout,
                           transcendentals=0,
                           bytes_accessed=act_bytes + w_bytes + out_bytes)
    params = pltpu.CompilerParams(
        dimension_semantics=("parallel",),     # shard tiles across TCs on v7x
        vmem_limit_bytes=32 * 1024 * 1024)

    if compute_stats:
        kernel = functools.partial(_conv_stats_kernel,
                                   tile_h=tile_h, width=width)
        out, stats = pl.pallas_call(
            kernel,
            grid=(g,),
            in_specs=in_specs,
            out_specs=(out_spec,
                       pl.BlockSpec((None, 8, cout), lambda i: (i, 0, 0))),
            out_shape=(out_shape,
                       jax.ShapeDtypeStruct((g, 8, cout), jnp.float32)),
            compiler_params=params,
            cost_estimate=cost,
        )(xb, w_flat)
        return out, stats

    kernel = functools.partial(_conv_kernel, tile_h=tile_h, width=width)
    out = pl.pallas_call(
        kernel,
        grid=(g,),
        in_specs=in_specs,
        out_specs=out_spec,
        out_shape=out_shape,
        compiler_params=params,
        cost_estimate=cost,
    )(xb, w_flat)
    return out, None


# ----------------------------------------------------------------------------
# Wrapper glue (XLA): deferred BN-affine/ReLU fused into the halo-tile build.
# ----------------------------------------------------------------------------
def _build_input_tiles(act, scale, bias, relu, tile_h):
    """Apply the previous layer's deferred BN affine / ReLU (fused into this
    restructuring pass, so no extra HBM round trip), zero-pad channels to a
    multiple of 8 and spatially by 1, and split H into row tiles with a 2-row
    halo (duplication ~ (TH+2)/TH)."""
    n, h, w, c = act.shape
    y = act.astype(jnp.float32)
    if scale is not None:
        y = y * scale + bias        # folded BN: one FMA per element
    if relu:
        y = jnp.maximum(y, 0.0)
    cp = _round_up(c, 8)
    if cp != c:
        y = jnp.pad(y, ((0, 0), (0, 0), (0, 0), (0, cp - c)))
    y = y.astype(ACT_DTYPE)
    yp = jnp.pad(y, ((0, 0), (1, 1), (1, 1), (0, 0)))      # spatial zero pad
    num_t = h // tile_h
    tiles = [lax.slice_in_dim(yp, t * tile_h, t * tile_h + tile_h + 2, axis=1)
             for t in range(num_t)]
    xb = jnp.stack(tiles, axis=1)               # (N, nt, TH+2, W+2, Cp)
    return xb.reshape(n * num_t, tile_h + 2, w + 2, cp)


def _prep_weights(w_hwio, cp):
    kh, kw, cin, cout = w_hwio.shape
    if cp != cin:
        w_hwio = jnp.pad(w_hwio, ((0, 0), (0, 0), (0, cp - cin), (0, 0)))
    return w_hwio.reshape(kh * kw * cp, cout).astype(ACT_DTYPE)


def dncnn_forward(x_nchw, layers, eps=_BN_EPS):
    x = jnp.transpose(x_nchw, (0, 2, 3, 1)).astype(jnp.float32)  # NCHW->NHWC
    n, h, w, _ = x.shape
    tile_h = _pick_tile_h(h, w)
    num_t = h // tile_h
    m = n * h * w

    act = x
    # Deferred elementwise op from the previous layer (BN affine and/or ReLU).
    scale, bias, relu = None, None, False

    for idx, lyr in enumerate(layers):
        is_last = idx == len(layers) - 1
        cp = _round_up(act.shape[-1], 8)
        xb = _build_input_tiles(act, scale, bias, relu, tile_h)
        w_flat = _prep_weights(lyr['w'], cp)
        out_dtype = jnp.float32 if is_last else ACT_DTYPE

        y_flat, stats = _conv3x3_pallas(
            xb, w_flat, tile_h=tile_h, width=w, out_dtype=out_dtype,
            compute_stats=lyr['bn'])

        cout = lyr['w'].shape[-1]
        act = y_flat.reshape(n, num_t, tile_h, w, cout).reshape(n, h, w, cout)

        if lyr['bn']:
            # Training-mode BatchNorm2d batch statistics (biased variance),
            # from the per-tile partial sums computed inside the kernel.
            ssum = jnp.sum(stats[:, 0, :], axis=0)
            ssq = jnp.sum(stats[:, 1, :], axis=0)
            mean = ssum / m
            var = jnp.maximum(ssq / m - mean * mean, 0.0)
            scale = lyr['gamma'] * lax.rsqrt(var + eps)
            bias = lyr['beta'] - mean * scale
            relu = lyr['relu']
        else:
            scale, bias, relu = None, None, lyr['relu']

    # The last layer has no BN/ReLU, so `act` is already the final output.
    return jnp.transpose(act.astype(jnp.float32), (0, 3, 1, 2))   # -> NCHW


# ----------------------------------------------------------------------------
# DnCNN parameter construction
# ----------------------------------------------------------------------------
def init_dncnn_params(key, input_features, middle_features, num_conv_layers):
    if input_features == 5:
        output_features = 4
    elif input_features == 15:
        output_features = 12
    else:
        raise Exception('Invalid number of input features')

    layers = []

    def conv_w(k, cin, cout):
        # kaiming_normal fan_in: std = sqrt(2 / (cin * 3 * 3)); HWIO layout.
        std = math.sqrt(2.0 / (cin * 9))
        return std * jax.random.normal(k, (3, 3, cin, cout), jnp.float32)

    keys = jax.random.split(key, 2 * num_conv_layers)
    ki = 0

    # first: conv + relu
    layers.append(dict(w=conv_w(keys[ki], input_features, middle_features),
                       gamma=jnp.ones((middle_features,), jnp.float32),
                       beta=jnp.zeros((middle_features,), jnp.float32),
                       bn=False, relu=True))
    ki += 1

    # middle: conv + batchnorm + relu
    for _ in range(num_conv_layers - 2):
        g = 1.0 + 0.1 * jax.random.normal(keys[ki], (middle_features,),
                                          jnp.float32)
        ki += 1
        b = 0.1 * jax.random.normal(keys[ki], (middle_features,), jnp.float32)
        ki += 1
        layers.append(dict(w=conv_w(keys[ki], middle_features, middle_features),
                           gamma=g, beta=b, bn=True, relu=True))
        ki += 1

    # last: conv only
    layers.append(dict(w=conv_w(keys[ki], middle_features, output_features),
                       gamma=jnp.ones((output_features,), jnp.float32),
                       beta=jnp.zeros((output_features,), jnp.float32),
                       bn=False, relu=False))
    return layers, output_features


# ----------------------------------------------------------------------------
# Pure-JAX f32 reference (for correctness check)
# ----------------------------------------------------------------------------
def dncnn_reference(x_nchw, layers, eps=_BN_EPS):
    x = jnp.transpose(x_nchw, (0, 2, 3, 1))

    def conv(x, w):
        return lax.conv_general_dilated(
            x, w, window_strides=(1, 1), padding='SAME',
            dimension_numbers=('NHWC', 'HWIO', 'NHWC'))

    for lyr in layers:
        y = conv(x, lyr['w'])
        if lyr['bn']:
            mean = jnp.mean(y, axis=(0, 1, 2), keepdims=True)
            var = jnp.mean((y - mean) ** 2, axis=(0, 1, 2), keepdims=True)
            y = (y - mean) * lax.rsqrt(var + eps)
            y = y * lyr['gamma'] + lyr['beta']
        if lyr['relu']:
            y = jnp.maximum(y, 0.0)
        x = y
    return jnp.transpose(x, (0, 3, 1, 2))


# ----------------------------------------------------------------------------
if __name__ == "__main__":
    key = jax.random.PRNGKey(0)
    k_params, k_x = jax.random.split(key)

    N, H, W = 2, 16, 16
    input_features, middle_features, num_conv_layers = 5, 32, 4

    layers, output_features = init_dncnn_params(
        k_params, input_features, middle_features, num_conv_layers)

    x = jax.random.normal(k_x, (N, input_features, H, W), jnp.float32)

    fwd = jax.jit(lambda inp: dncnn_forward(inp, layers))
    out = jax.block_until_ready(fwd(x))

    assert out.shape == (N, output_features, H, W), out.shape

    ref = jax.block_until_ready(
        jax.jit(lambda inp: dncnn_reference(inp, layers))(x))

    # Tolerance accounts for the deliberate bf16 activation/matmul-operand
    # storage (accumulation is f32); set ACT_DTYPE=jnp.float32 for 1e-3.
    tol = 5e-2 if ACT_DTYPE == jnp.bfloat16 else 1e-3
    max_err = float(jnp.max(jnp.abs(out - ref)))
    assert jnp.allclose(out, ref, rtol=tol, atol=tol), max_err

    # TODO(synk): BatchNorm running_mean/running_var buffer updates (training-
    # mode side effects) are stateful and not modeled; only the forward output
    # is reproduced.
    print("KERNEL_OK")
</pallas_src>

<mosaic_0001>
module attributes {stable_mosaic.version = 11 : i64} {
  func.func @_conv_kernel(%arg0: i32, %arg1: memref<1x10x18x8xbf16, #tpu.memory_space<vmem>>, %arg2: memref<72x32xbf16, #tpu.memory_space<vmem>>, %arg3: memref<1x128x32xbf16, #tpu.memory_space<vmem>>) attributes {dimension_semantics = [#tpu.dimension_semantics<parallel>], iteration_bounds = array<i64: 4>, scalar_prefetch = 0 : i64, scratch_operands = 0 : i64, tpu.core_type = #tpu.core_type<tc>, window_params = [{transform_indices = @transform_0, window_bounds = array<i64: 1, 10, 18, 8>}, {pipeline_mode = #tpu.pipeline_mode<synchronous>, transform_indices = @transform_1, window_bounds = array<i64: 72, 32>}, {transform_indices = @transform_2, window_bounds = array<i64: 1, 128, 32>}]} {
    %c0 = arith.constant 0 : index
    %c0_0 = arith.constant 0 : index
    %c0_1 = arith.constant 0 : index
    %c0_2 = arith.constant 0 : index
    %0 = vector.load %arg1[%c0, %c0_0, %c0_1, %c0_2] : memref<1x10x18x8xbf16, #tpu.memory_space<vmem>>, vector<1x10x18x8xbf16>
    %1 = vector.shape_cast %0 : vector<1x10x18x8xbf16> to vector<10x18x8xbf16>
    %2 = vector.extract_strided_slice %1 {offsets = [0, 0, 0], sizes = [8, 16, 8], strides = [1, 1, 1]} : vector<10x18x8xbf16> to vector<8x16x8xbf16>
    %3 = vector.extract_strided_slice %1 {offsets = [0, 1, 0], sizes = [8, 16, 8], strides = [1, 1, 1]} : vector<10x18x8xbf16> to vector<8x16x8xbf16>
    %4 = vector.extract_strided_slice %1 {offsets = [0, 2, 0], sizes = [8, 16, 8], strides = [1, 1, 1]} : vector<10x18x8xbf16> to vector<8x16x8xbf16>
    %5 = vector.extract_strided_slice %1 {offsets = [1, 0, 0], sizes = [8, 16, 8], strides = [1, 1, 1]} : vector<10x18x8xbf16> to vector<8x16x8xbf16>
    %6 = vector.extract_strided_slice %1 {offsets = [1, 1, 0], sizes = [8, 16, 8], strides = [1, 1, 1]} : vector<10x18x8xbf16> to vector<8x16x8xbf16>
    %7 = vector.extract_strided_slice %1 {offsets = [1, 2, 0], sizes = [8, 16, 8], strides = [1, 1, 1]} : vector<10x18x8xbf16> to vector<8x16x8xbf16>
    %8 = vector.extract_strided_slice %1 {offsets = [2, 0, 0], sizes = [8, 16, 8], strides = [1, 1, 1]} : vector<10x18x8xbf16> to vector<8x16x8xbf16>
    %9 = vector.extract_strided_slice %1 {offsets = [2, 1, 0], sizes = [8, 16, 8], strides = [1, 1, 1]} : vector<10x18x8xbf16> to vector<8x16x8xbf16>
    %10 = vector.extract_strided_slice %1 {offsets = [2, 2, 0], sizes = [8, 16, 8], strides = [1, 1, 1]} : vector<10x18x8xbf16> to vector<8x16x8xbf16>
    %11 = tpu.concatenate %2, %3, %4, %5, %6, %7, %8, %9, %10 in 2 : vector<8x16x8xbf16>, vector<8x16x8xbf16>, vector<8x16x8xbf16>, vector<8x16x8xbf16>, vector<8x16x8xbf16>, vector<8x16x8xbf16>, vector<8x16x8xbf16>, vector<8x16x8xbf16>, vector<8x16x8xbf16> -> vector<8x16x72xbf16>
    %12 = vector.shape_cast %11 : vector<8x16x72xbf16> to vector<128x72xbf16>
    %c0_3 = arith.constant 0 : index
    %c0_4 = arith.constant 0 : index
    %13 = vector.load %arg2[%c0_3, %c0_4] : memref<72x32xbf16, #tpu.memory_space<vmem>>, vector<72x32xbf16>
    %cst = arith.constant dense<0.000000e+00> : vector<128x32xf32>
    %14 = tpu.matmul %12, %13, %cst {dimension_numbers = #tpu.dot_dimension_numbers<[1], [0], [0], [1], [0, 0, 1, 1], [], []>} : vector<128x72xbf16>, vector<72x32xbf16>, vector<128x32xf32> -> vector<128x32xf32>
    %15 = arith.truncf %14 : vector<128x32xf32> to vector<128x32xbf16>
    %c0_5 = arith.constant 0 : index
    %c0_6 = arith.constant 0 : index
    %c0_7 = arith.constant 0 : index
    %16 = vector.load %arg3[%c0_5, %c0_6, %c0_7] : memref<1x128x32xbf16, #tpu.memory_space<vmem>>, vector<1x128x32xbf16>
    %17 = vector.shape_cast %16 : vector<1x128x32xbf16> to vector<128x32xbf16>
    %18 = vector.shape_cast %15 : vector<128x32xbf16> to vector<1x128x32xbf16>
    tpu.vector_store %arg3[%c0_5, %c0_6, %c0_7], %18 {strides = array<i32>} : memref<1x128x32xbf16, #tpu.memory_space<vmem>>, vector<1x128x32xbf16>,
    return
  }
  func.func @transform_0(%arg0: i32) -> (i32, i32, i32, i32) {
    %c0_i32 = arith.constant 0 : i32
    %c0_i32_0 = arith.constant 0 : i32
    %c0_i32_1 = arith.constant 0 : i32
    %c0_i32_2 = arith.constant 0 : i32
    return %arg0, %c0_i32, %c0_i32_0, %c0_i32_1 : i32, i32, i32, i32
  }
  func.func @transform_1(%arg0: i32) -> (i32, i32) {
    %c0_i32 = arith.constant 0 : i32
    %c0_i32_0 = arith.constant 0 : i32
    %c0_i32_1 = arith.constant 0 : i32
    return %c0_i32, %c0_i32_0 : i32, i32
  }
  func.func @transform_2(%arg0: i32) -> (i32, i32, i32) {
    %c0_i32 = arith.constant 0 : i32
    %c0_i32_0 = arith.constant 0 : i32
    %c0_i32_1 = arith.constant 0 : i32
    return %arg0, %c0_i32, %c0_i32_0 : i32, i32, i32
  }
}

module attributes {stable_mosaic.version = 11 : i64} {
  func.func @_conv_stats_kernel(%arg0: i32, %arg1: memref<1x10x18x32xbf16, #tpu.memory_space<vmem>>, %arg2: memref<288x32xbf16, #tpu.memory_space<vmem>>, %arg3: memref<1x128x32xbf16, #tpu.memory_space<vmem>>, %arg4: memref<1x8x32xf32, #tpu.memory_space<vmem>>) attributes {dimension_semantics = [#tpu.dimension_semantics<parallel>], iteration_bounds = array<i64: 4>, scalar_prefetch = 0 : i64, scratch_operands = 0 : i64, tpu.core_type = #tpu.core_type<tc>, window_params = [{transform_indices = @transform_0, window_bounds = array<i64: 1, 10, 18, 32>}, {pipeline_mode = #tpu.pipeline_mode<synchronous>, transform_indices = @transform_1, window_bounds = array<i64: 288, 32>}, {transform_indices = @transform_2, window_bounds = array<i64: 1, 128, 32>}, {transform_indices = @transform_3, window_bounds = array<i64: 1, 8, 32>}]} {
    %c0 = arith.constant 0 : index
    %c0_0 = arith.constant 0 : index
    %c0_1 = arith.constant 0 : index
    %c0_2 = arith.constant 0 : index
    %0 = vector.load %arg1[%c0, %c0_0, %c0_1, %c0_2] : memref<1x10x18x32xbf16, #tpu.memory_space<vmem>>, vector<1x10x18x32xbf16>
    %1 = vector.shape_cast %0 : vector<1x10x18x32xbf16> to vector<10x18x32xbf16>
    %2 = vector.extract_strided_slice %1 {offsets = [0, 0, 0], sizes = [8, 16, 32], strides = [1, 1, 1]} : vector<10x18x32xbf16> to vector<8x16x32xbf16>
    %3 = vector.extract_strided_slice %1 {offsets = [0, 1, 0], sizes = [8, 16, 32], strides = [1, 1, 1]} : vector<10x18x32xbf16> to vector<8x16x32xbf16>
    %4 = vector.extract_strided_slice %1 {offsets = [0, 2, 0], sizes = [8, 16, 32], strides = [1, 1, 1]} : vector<10x18x32xbf16> to vector<8x16x32xbf16>
    %5 = vector.extract_strided_slice %1 {offsets = [1, 0, 0], sizes = [8, 16, 32], strides = [1, 1, 1]} : vector<10x18x32xbf16> to vector<8x16x32xbf16>
    %6 = vector.extract_strided_slice %1 {offsets = [1, 1, 0], sizes = [8, 16, 32], strides = [1, 1, 1]} : vector<10x18x32xbf16> to vector<8x16x32xbf16>
    %7 = vector.extract_strided_slice %1 {offsets = [1, 2, 0], sizes = [8, 16, 32], strides = [1, 1, 1]} : vector<10x18x32xbf16> to vector<8x16x32xbf16>
    %8 = vector.extract_strided_slice %1 {offsets = [2, 0, 0], sizes = [8, 16, 32], strides = [1, 1, 1]} : vector<10x18x32xbf16> to vector<8x16x32xbf16>
    %9 = vector.extract_strided_slice %1 {offsets = [2, 1, 0], sizes = [8, 16, 32], strides = [1, 1, 1]} : vector<10x18x32xbf16> to vector<8x16x32xbf16>
    %10 = vector.extract_strided_slice %1 {offsets = [2, 2, 0], sizes = [8, 16, 32], strides = [1, 1, 1]} : vector<10x18x32xbf16> to vector<8x16x32xbf16>
    %11 = tpu.concatenate %2, %3, %4, %5, %6, %7, %8, %9, %10 in 2 : vector<8x16x32xbf16>, vector<8x16x32xbf16>, vector<8x16x32xbf16>, vector<8x16x32xbf16>, vector<8x16x32xbf16>, vector<8x16x32xbf16>, vector<8x16x32xbf16>, vector<8x16x32xbf16>, vector<8x16x32xbf16> -> vector<8x16x288xbf16>
    %12 = vector.shape_cast %11 : vector<8x16x288xbf16> to vector<128x288xbf16>
    %c0_3 = arith.constant 0 : index
    %c0_4 = arith.constant 0 : index
    %13 = vector.load %arg2[%c0_3, %c0_4] : memref<288x32xbf16, #tpu.memory_space<vmem>>, vector<288x32xbf16>
    %cst = arith.constant dense<0.000000e+00> : vector<128x32xf32>
    %14 = tpu.matmul %12, %13, %cst {dimension_numbers = #tpu.dot_dimension_numbers<[1], [0], [0], [1], [0, 0, 1, 1], [], []>} : vector<128x288xbf16>, vector<288x32xbf16>, vector<128x32xf32> -> vector<128x32xf32>
    %cst_5 = arith.constant dense<0.000000e+00> : vector<32xf32>
    %15 = vector.multi_reduction <add>, %14, %cst_5 [0] : vector<128x32xf32> to vector<32xf32>
    %16 = vector.shape_cast %15 : vector<32xf32> to vector<1x32xf32>
    %17 = arith.mulf %14, %14 : vector<128x32xf32>
    %cst_6 = arith.constant dense<0.000000e+00> : vector<32xf32>
    %18 = vector.multi_reduction <add>, %17, %cst_6 [0] : vector<128x32xf32> to vector<32xf32>
    %19 = vector.shape_cast %18 : vector<32xf32> to vector<1x32xf32>
    %c0_7 = arith.constant 0 : index
    %c0_8 = arith.constant 0 : index
    %c0_9 = arith.constant 0 : index
    %20 = vector.load %arg4[%c0_7, %c0_8, %c0_9] : memref<1x8x32xf32, #tpu.memory_space<vmem>>, vector<1x1x32xf32>
    %21 = vector.shape_cast %20 : vector<1x1x32xf32> to vector<1x32xf32>
    %22 = vector.shape_cast %16 : vector<1x32xf32> to vector<1x1x32xf32>
    tpu.vector_store %arg4[%c0_7, %c0_8, %c0_9], %22 {strides = array<i32>} : memref<1x8x32xf32, #tpu.memory_space<vmem>>, vector<1x1x32xf32>,
    %c0_10 = arith.constant 0 : index
    %c1 = arith.constant 1 : index
    %c0_11 = arith.constant 0 : index
    %23 = vector.load %arg4[%c0_10, %c1, %c0_11] : memref<1x8x32xf32, #tpu.memory_space<vmem>>, vector<1x1x32xf32>
    %24 = vector.shape_cast %23 : vector<1x1x32xf32> to vector<1x32xf32>
    %25 = vector.shape_cast %19 : vector<1x32xf32> to vector<1x1x32xf32>
    tpu.vector_store %arg4[%c0_10, %c1, %c0_11], %25 {strides = array<i32>} : memref<1x8x32xf32, #tpu.memory_space<vmem>>, vector<1x1x32xf32>,
    %cst_12 = arith.constant 0.000000e+00 : f32
    %26 = vector.broadcast %cst_12 : f32 to vector<6x32xf32>
    %c0_13 = arith.constant 0 : index
    %c2 = arith.constant 2 : index
    %c0_14 = arith.constant 0 : index
    %27 = vector.load %arg4[%c0_13, %c2, %c0_14] : memref<1x8x32xf32, #tpu.memory_space<vmem>>, vector<1x6x32xf32>
    %28 = vector.shape_cast %27 : vector<1x6x32xf32> to vector<6x32xf32>
    %29 = vector.shape_cast %26 : vector<6x32xf32> to vector<1x6x32xf32>
    tpu.vector_store %arg4[%c0_13, %c2, %c0_14], %29 {strides = array<i32>} : memref<1x8x32xf32, #tpu.memory_space<vmem>>, vector<1x6x32xf32>,
    %30 = arith.truncf %14 : vector<128x32xf32> to vector<128x32xbf16>
    %c0_15 = arith.constant 0 : index
    %c0_16 = arith.constant 0 : index
    %c0_17 = arith.constant 0 : index
    %31 = vector.load %arg3[%c0_15, %c0_16, %c0_17] : memref<1x128x32xbf16, #tpu.memory_space<vmem>>, vector<1x128x32xbf16>
    %32 = vector.shape_cast %31 : vector<1x128x32xbf16> to vector<128x32xbf16>
    %33 = vector.shape_cast %30 : vector<128x32xbf16> to vector<1x128x32xbf16>
    tpu.vector_store %arg3[%c0_15, %c0_16, %c0_17], %33 {strides = array<i32>} : memref<1x128x32xbf16, #tpu.memory_space<vmem>>, vector<1x128x32xbf16>,
    return
  }
  func.func @transform_0(%arg0: i32) -> (i32, i32, i32, i32) {
    %c0_i32 = arith.constant 0 : i32
    %c0_i32_0 = arith.constant 0 : i32
    %c0_i32_1 = arith.constant 0 : i32
    %c0_i32_2 = arith.constant 0 : i32
    return %arg0, %c0_i32, %c0_i32_0, %c0_i32_1 : i32, i32, i32, i32
  }
  func.func @transform_1(%arg0: i32) -> (i32, i32) {
    %c0_i32 = arith.constant 0 : i32
    %c0_i32_0 = arith.constant 0 : i32
    %c0_i32_1 = arith.constant 0 : i32
    return %c0_i32, %c0_i32_0 : i32, i32
  }
  func.func @transform_2(%arg0: i32) -> (i32, i32, i32) {
    %c0_i32 = arith.constant 0 : i32
    %c0_i32_0 = arith.constant 0 : i32
    %c0_i32_1 = arith.constant 0 : i32
    return %arg0, %c0_i32, %c0_i32_0 : i32, i32, i32
  }
  func.func @transform_3(%arg0: i32) -> (i32, i32, i32) {
    %c0_i32 = arith.constant 0 : i32
    %c0_i32_0 = arith.constant 0 : i32
    %c0_i32_1 = arith.constant 0 : i32
    return %arg0, %c0_i32, %c0_i32_0 : i32, i32, i32
  }
}

module attributes {stable_mosaic.version = 11 : i64} {
  func.func @_conv_kernel(%arg0: i32, %arg1: memref<1x10x18x32xbf16, #tpu.memory_space<vmem>>, %arg2: memref<288x4xbf16, #tpu.memory_space<vmem>>, %arg3: memref<1x128x4xf32, #tpu.memory_space<vmem>>) attributes {dimension_semantics = [#tpu.dimension_semantics<parallel>], iteration_bounds = array<i64: 4>, scalar_prefetch = 0 : i64, scratch_operands = 0 : i64, tpu.core_type = #tpu.core_type<tc>, window_params = [{transform_indices = @transform_0, window_bounds = array<i64: 1, 10, 18, 32>}, {pipeline_mode = #tpu.pipeline_mode<synchronous>, transform_indices = @transform_1, window_bounds = array<i64: 288, 4>}, {transform_indices = @transform_2, window_bounds = array<i64: 1, 128, 4>}]} {
    %c0 = arith.constant 0 : index
    %c0_0 = arith.constant 0 : index
    %c0_1 = arith.constant 0 : index
    %c0_2 = arith.constant 0 : index
    %0 = vector.load %arg1[%c0, %c0_0, %c0_1, %c0_2] : memref<1x10x18x32xbf16, #tpu.memory_space<vmem>>, vector<1x10x18x32xbf16>
    %1 = vector.shape_cast %0 : vector<1x10x18x32xbf16> to vector<10x18x32xbf16>
    %2 = vector.extract_strided_slice %1 {offsets = [0, 0, 0], sizes = [8, 16, 32], strides = [1, 1, 1]} : vector<10x18x32xbf16> to vector<8x16x32xbf16>
    %3 = vector.extract_strided_slice %1 {offsets = [0, 1, 0], sizes = [8, 16, 32], strides = [1, 1, 1]} : vector<10x18x32xbf16> to vector<8x16x32xbf16>
    %4 = vector.extract_strided_slice %1 {offsets = [0, 2, 0], sizes = [8, 16, 32], strides = [1, 1, 1]} : vector<10x18x32xbf16> to vector<8x16x32xbf16>
    %5 = vector.extract_strided_slice %1 {offsets = [1, 0, 0], sizes = [8, 16, 32], strides = [1, 1, 1]} : vector<10x18x32xbf16> to vector<8x16x32xbf16>
    %6 = vector.extract_strided_slice %1 {offsets = [1, 1, 0], sizes = [8, 16, 32], strides = [1, 1, 1]} : vector<10x18x32xbf16> to vector<8x16x32xbf16>
    %7 = vector.extract_strided_slice %1 {offsets = [1, 2, 0], sizes = [8, 16, 32], strides = [1, 1, 1]} : vector<10x18x32xbf16> to vector<8x16x32xbf16>
    %8 = vector.extract_strided_slice %1 {offsets = [2, 0, 0], sizes = [8, 16, 32], strides = [1, 1, 1]} : vector<10x18x32xbf16> to vector<8x16x32xbf16>
    %9 = vector.extract_strided_slice %1 {offsets = [2, 1, 0], sizes = [8, 16, 32], strides = [1, 1, 1]} : vector<10x18x32xbf16> to vector<8x16x32xbf16>
    %10 = vector.extract_strided_slice %1 {offsets = [2, 2, 0], sizes = [8, 16, 32], strides = [1, 1, 1]} : vector<10x18x32xbf16> to vector<8x16x32xbf16>
    %11 = tpu.concatenate %2, %3, %4, %5, %6, %7, %8, %9, %10 in 2 : vector<8x16x32xbf16>, vector<8x16x32xbf16>, vector<8x16x32xbf16>, vector<8x16x32xbf16>, vector<8x16x32xbf16>, vector<8x16x32xbf16>, vector<8x16x32xbf16>, vector<8x16x32xbf16>, vector<8x16x32xbf16> -> vector<8x16x288xbf16>
    %12 = vector.shape_cast %11 : vector<8x16x288xbf16> to vector<128x288xbf16>
    %c0_3 = arith.constant 0 : index
    %c0_4 = arith.constant 0 : index
    %13 = vector.load %arg2[%c0_3, %c0_4] : memref<288x4xbf16, #tpu.memory_space<vmem>>, vector<288x4xbf16>
    %cst = arith.constant dense<0.000000e+00> : vector<128x4xf32>
    %14 = tpu.matmul %12, %13, %cst {dimension_numbers = #tpu.dot_dimension_numbers<[1], [0], [0], [1], [0, 0, 1, 1], [], []>} : vector<128x288xbf16>, vector<288x4xbf16>, vector<128x4xf32> -> vector<128x4xf32>
    %c0_5 = arith.constant 0 : index
    %c0_6 = arith.constant 0 : index
    %c0_7 = arith.constant 0 : index
    %15 = vector.load %arg3[%c0_5, %c0_6, %c0_7] : memref<1x128x4xf32, #tpu.memory_space<vmem>>, vector<1x128x4xf32>
    %16 = vector.shape_cast %15 : vector<1x128x4xf32> to vector<128x4xf32>
    %17 = vector.shape_cast %14 : vector<128x4xf32> to vector<1x128x4xf32>
    tpu.vector_store %arg3[%c0_5, %c0_6, %c0_7], %17 {strides = array<i32>} : memref<1x128x4xf32, #tpu.memory_space<vmem>>, vector<1x128x4xf32>,
    return
  }
  func.func @transform_0(%arg0: i32) -> (i32, i32, i32, i32) {
    %c0_i32 = arith.constant 0 : i32
    %c0_i32_0 = arith.constant 0 : i32
    %c0_i32_1 = arith.constant 0 : i32
    %c0_i32_2 = arith.constant 0 : i32
    return %arg0, %c0_i32, %c0_i32_0, %c0_i32_1 : i32, i32, i32, i32
  }
  func.func @transform_1(%arg0: i32) -> (i32, i32) {
    %c0_i32 = arith.constant 0 : i32
    %c0_i32_0 = arith.constant 0 : i32
    %c0_i32_1 = arith.constant 0 : i32
    return %c0_i32, %c0_i32_0 : i32, i32
  }
  func.func @transform_2(%arg0: i32) -> (i32, i32, i32) {
    %c0_i32 = arith.constant 0 : i32
    %c0_i32_0 = arith.constant 0 : i32
    %c0_i32_1 = arith.constant 0 : i32
    return %arg0, %c0_i32, %c0_i32_0 : i32, i32, i32
  }
}

</mosaic_0001>

<llo_original>
// kernel: _lambda_.4
$region0: #{_lambda_.4}
  #allocation0 [shape = 'u32[]', space=smem, size = 0x4, offset = 0x4, fixed_abs, tag = 'smem constant byte address 0x4 - core index']
  #allocation1 [shape = 'u32[72,128]{1,0:T(1,128)}', space=vmem, size = 0x9000, scoped, tag = 'internal scratch']
  %s0 = inlined_call_operand.vmem [shape: bf16[4,10,18,8], index: 0, kind: input, shape index: {}]
  %s1 = inlined_call_operand.vmem [shape: bf16[72,32], index: 1, kind: input, shape index: {}]
  %s2 = inlined_call_operand.vmem [shape: bf16[4,128,32], index: 2, kind: output, shape index: {}]
  %s3 = sld [smem:[#allocation0]]
  $region41: #{_lambda_.4} parent=0
    _
  %s5 = ssub.s32 1, %s3
  %s6 = scalar_select 0, %s5, %s3
  loop: start=0, step=1, limit=6
  $region2: #{_lambda_.4} parent=0 // loop_pre_header
    _
  $region3: #{_lambda_.4} parent=0 // loop_header
    %s8 = sphi 0, %s12
    %p9 = scmp.ge.s32.totalorder %s8, 6
    %s18 = sphi 0, %s20
    %s21 = sphi 0, %s18
    %s22 = sphi 0, %s21
    %s38 = sphi 0, %s22
    %s42 = sphi 0, %s42
    %s44 = sphi 0, %s42
    %s45 = sphi 0, %s44
    %s59 = sphi 0, %s45
    %s65 = sphi 0, %s67
    %s68 = sphi 0, %s65
    %s69 = sphi 0, %s68
    %s85 = sphi 0, %s69
  $region4: #{_lambda_.4} parent=0 // loop_header_branch
    %11 = sbr.rel (%p9) target = $region8
  $region5: #{_lambda_.4} parent=0 // loop_body
    %s13 = ssub.s32 %s8, 1
    %s14 = ssub.s32 %s8, 2
    %s15 = sadd.s32 %s8, 1
    %s16 = ssub.s32 %s8, %s15
    %p17 = scmp.eq.s32.totalorder %s16, 0
    %s19 = sadd.s32 %s18, 1
    %s20 = scalar_select %p17, %s18, %s19
    %p23 = pneg %p17
    %p24 = scmp.eq.s32.totalorder %s8, 3
    %p25 = por %p23, %p24
    %p26 = scmp.ne.s32.totalorder %s18, %s21
    %p27 = scmp.eq.s32.totalorder %s8, 0
    %p28 = por %p26, %p27
    %p29 = scmp.ne.s32.totalorder %s18, %s21
    %p30 = scmp.eq.s32.totalorder %s13, 3
    %p31 = por %p29, %p30
    %p32 = scmp.ne.s32.totalorder %s21, %s22
    %p33 = scmp.eq.s32.totalorder %s13, 0
    %p34 = por %p32, %p33
    %p35 = scmp.ne.s32.totalorder %s21, %s22
    %p36 = scmp.eq.s32.totalorder %s14, 3
    %p37 = por %p35, %p36
    %p39 = scmp.ne.s32.totalorder %s22, %s38
    %p40 = scmp.eq.s32.totalorder %s14, 0
    %p41 = por %p39, %p40
    %s43 = sadd.s32 %s42, 1
    %p46 = scmp.eq.s32.totalorder %s8, 3
    %p47 = scmp.ne.s32.totalorder %s42, %s44
    %p48 = scmp.eq.s32.totalorder %s8, 0
    %p49 = por %p47, %p48
    %p50 = scmp.ne.s32.totalorder %s42, %s44
    %p51 = scmp.eq.s32.totalorder %s13, 3
    %p52 = por %p50, %p51
    %p53 = scmp.ne.s32.totalorder %s44, %s45
    %p54 = scmp.eq.s32.totalorder %s13, 0
    %p55 = por %p53, %p54
    %p56 = scmp.ne.s32.totalorder %s44, %s45
    %p57 = scmp.eq.s32.totalorder %s14, 3
    %p58 = por %p56, %p57
    %p60 = scmp.ne.s32.totalorder %s45, %s59
    %p61 = scmp.eq.s32.totalorder %s14, 0
    %p62 = por %p60, %p61
    %s63 = ssub.s32 %s8, %s15
    %p64 = scmp.eq.s32.totalorder %s63, 0
    %s66 = sadd.s32 %s65, 1
    %s67 = scalar_select %p64, %s65, %s66
    %p70 = pneg %p64
    %p71 = scmp.eq.s32.totalorder %s8, 3
    %p72 = por %p70, %p71
    %p73 = scmp.ne.s32.totalorder %s65, %s68
    %p74 = scmp.eq.s32.totalorder %s8, 0
    %p75 = por %p73, %p74
    %p76 = scmp.ne.s32.totalorder %s65, %s68
    %p77 = scmp.eq.s32.totalorder %s13, 3
    %p78 = por %p76, %p77
    %p79 = scmp.ne.s32.totalorder %s68, %s69
    %p80 = scmp.eq.s32.totalorder %s13, 0
    %p81 = por %p79, %p80
    %p82 = scmp.ne.s32.totalorder %s68, %s69
    %p83 = scmp.eq.s32.totalorder %s14, 3
    %p84 = por %p82, %p83
    %p86 = scmp.ne.s32.totalorder %s69, %s85
    %p87 = scmp.eq.s32.totalorder %s14, 0
    %p88 = por %p86, %p87
    %p89 = scmp.le.s32.totalorder 1, %s8
    %p90 = scmp.lt.s32.totalorder %s8, 5
    %p91 = pnand %p89, %p90
    %p92 = pneg %p91
    // Predicated region
    $region9: #{_lambda_.4} parent=5 // pred_check
      _
    $region10: #{_lambda_.4} parent=5 // pred_check_branch
      %94 = sbr.rel (%p91) target = $region12
    $region11: #{_lambda_.4} parent=5 // pred_region
      %s95 = ssub.s32 %s8, 1
      // Predicated region
      $region13: #{_lambda_.4} parent=11 // pred_check
        %p96 = pneg %p55
      $region14: #{_lambda_.4} parent=11 // pred_check_branch
        %98 = sbr.rel (%p96) target = $region16
      $region15: #{_lambda_.4} parent=11 // pred_region
        _
      $region16: #{_lambda_.4} parent=11 // pred_fallthru
        _
    $region12: #{_lambda_.4} parent=5 // pred_fallthru
      _
    %p99 = scmp.lt.s32.totalorder %s8, 4
    // Predicated region
    $region17: #{_lambda_.4} parent=5 // pred_check
      %p100 = pneg %p99
    $region18: #{_lambda_.4} parent=5 // pred_check_branch
      %102 = sbr.rel (%p100) target = $region20
    $region19: #{_lambda_.4} parent=5 // pred_region
      // Predicated region
      $region21: #{_lambda_.4} parent=19 // pred_check
        %p103 = pneg %p28
      $region22: #{_lambda_.4} parent=19 // pred_check_branch
        %105 = sbr.rel (%p103) target = $region24
      $region23: #{_lambda_.4} parent=19 // pred_region
        %p106 = scmp.lt.s32.totalorder %s8, 3
        %s107 = scalar_select %p106, %s8, 3
        %s108 = smul.addr %s107, 30
        %s109 = smul.addr %s108, 4
        %s110 = scalar_lea.vmem %s0, %s109
      $region24: #{_lambda_.4} parent=19 // pred_fallthru
        _
    $region20: #{_lambda_.4} parent=5 // pred_fallthru
      _
    %p111 = scmp.le.s32.totalorder 1, %s8
    %p112 = scmp.lt.s32.totalorder %s8, 5
    %p113 = pnand %p111, %p112
    %p114 = pneg %p113
    // Predicated region
    $region25: #{_lambda_.4} parent=5 // pred_check
      _
    $region26: #{_lambda_.4} parent=5 // pred_check_branch
      %116 = sbr.rel (%p113) target = $region28
    $region27: #{_lambda_.4} parent=5 // pred_region
      %s117 = ssub.s32 %s8, 1
      %p118 = scmp.lt.s32.totalorder %s13, 3
      %s119 = scalar_select %p118, %s13, 3
      %s120 = smul.addr %s119, 30
      %s121 = smul.addr %s120, 4
      %s122 = scalar_lea.vmem %s0, %s121
      %p123 = pneg %p34
      %p124 = pneg %p31
      %p125 = pneg %p55
      %p126 = pneg %p52
      %p127 = pneg %p81
      %p128 = pneg %p78
      %p129 = scmp.lt.s32.totalorder %s13, 3
      %s130 = scalar_select %p129, %s13, 3
      %s131 = smul.addr %s130, 16
      %s132 = smul.addr %s131, 4
      %s133 = scalar_lea.vmem %s2, %s132
      %p134 = scmp.lt.s32.totalorder %s13, 3
      %s135 = scalar_select %p134, %s13, 3
      %s136 = smul.addr %s135, 30
      %s137 = smul.addr %s136, 4
      %s138 = scalar_lea.vmem %s0, %s137
      %p139 = scmp.lt.s32.totalorder %s13, 3
      %s140 = scalar_select %p139, %s13, 3
      %s141 = smul.addr %s140, 16
      %s142 = smul.addr %s141, 4
      %s143 = scalar_lea.vmem %s2, %s142
      %v145 = vld [vmem:[%s138] sm:$0xf]
      %v146 = vld [vmem:[%s138 + $0x4] sm:$0xf]
      %v147 = vld [vmem:[%s138 + $0x8] sm:$0x1]
      %v148 = vld [vmem:[%s138 + $0xc] sm:$0xf]
      %v149 = vld [vmem:[%s138 + $0x10] sm:$0xf]
      %v150 = vld [vmem:[%s138 + $0x14] sm:$0x1]
      %v151 = vld [vmem:[%s138 + $0x18] sm:$0xf]
      %v152 = vld [vmem:[%s138 + $0x1c] sm:$0xf]
      %v153 = vld [vmem:[%s138 + $0x20] sm:$0x1]
      %v154 = vld [vmem:[%s138 + $0x24] sm:$0xf]
      %v155 = vld [vmem:[%s138 + $0x28] sm:$0xf]
      %v156 = vld [vmem:[%s138 + $0x2c] sm:$0x1]
      %v157 = vld [vmem:[%s138 + $0x30] sm:$0xf]
      %v158 = vld [vmem:[%s138 + $0x34] sm:$0xf]
      %v159 = vld [vmem:[%s138 + $0x38] sm:$0x1]
      %v160 = vld [vmem:[%s138 + $0x3c] sm:$0xf]
      %v161 = vld [vmem:[%s138 + $0x40] sm:$0xf]
      %v162 = vld [vmem:[%s138 + $0x44] sm:$0x1]
      %v163 = vld [vmem:[%s138 + $0x48] sm:$0xf]
      %v164 = vld [vmem:[%s138 + $0x4c] sm:$0xf]
      %v165 = vld [vmem:[%s138 + $0x50] sm:$0x1]
      %v166 = vld [vmem:[%s138 + $0x54] sm:$0xf]
      %v167 = vld [vmem:[%s138 + $0x58] sm:$0xf]
      %v168 = vld [vmem:[%s138 + $0x5c] sm:$0x1]
      %v169 = vld [vmem:[%s138 + $0x60] sm:$0xf]
      %v170 = vld [vmem:[%s138 + $0x64] sm:$0xf]
      %v171 = vld [vmem:[%s138 + $0x68] sm:$0x1]
      %v172 = vld [vmem:[%s138 + $0x6c] sm:$0xf]
      %v173 = vld [vmem:[%s138 + $0x70] sm:$0xf]
      %v174 = vld [vmem:[%s138 + $0x74] sm:$0x1]
      %v191 = vunpack.c.l.b16 %v145
      %v192 = vunpack.c.l.b16 %v146
      %v193 = vunpack.c.l.b16 %v148
      %v194 = vunpack.c.l.b16 %v149
      %v195 = vunpack.c.l.b16 %v151
      %v196 = vunpack.c.l.b16 %v152
      %v197 = vunpack.c.l.b16 %v154
      %v198 = vunpack.c.l.b16 %v155
      %v199 = vunpack.c.l.b16 %v157
      %v200 = vunpack.c.l.b16 %v158
      %v201 = vunpack.c.l.b16 %v160
      %v202 = vunpack.c.l.b16 %v161
      %v203 = vunpack.c.l.b16 %v163
      %v204 = vunpack.c.l.b16 %v164
      %v205 = vunpack.c.l.b16 %v166
      %v206 = vunpack.c.l.b16 %v167
      %v207 = vpack.c.b16 %v192, %v191
      %v208 = vpack.c.b16 %v194, %v193
      %v209 = vpack.c.b16 %v196, %v195
      %v210 = vpack.c.b16 %v198, %v197
      %v211 = vpack.c.b16 %v200, %v199
      %v212 = vpack.c.b16 %v202, %v201
      %v213 = vpack.c.b16 %v204, %v203
      %v214 = vpack.c.b16 %v206, %v205
      %v223 = vunpack.c.l.b16 %v147
      %v224 = vunpack.c.l.b16 %v150
      %v225 = vunpack.c.l.b16 %v153
      %v226 = vunpack.c.l.b16 %v156
      %v227 = vunpack.c.l.b16 %v159
      %v228 = vunpack.c.l.b16 %v162
      %v229 = vunpack.c.l.b16 %v165
      %v230 = vunpack.c.l.b16 %v168
      %v231 = vpack.c.b16 %v223, %v223
      %v232 = vpack.c.b16 %v224, %v224
      %v233 = vpack.c.b16 %v225, %v225
      %v234 = vpack.c.b16 %v226, %v226
      %v235 = vpack.c.b16 %v227, %v227
      %v236 = vpack.c.b16 %v228, %v228
      %v237 = vpack.c.b16 %v229, %v229
      %v238 = vpack.c.b16 %v230, %v230
      %vm239 = vsmask.f32 7424
      %v241 = vshrl.u32 %v207, 16
      %v243 = vshll.u32 %v207, 16
      %v245 = vrot.slane %v243, 1
      %v246 = vor.u32 %v241, %v245
      %v248 = vshll.u32 %v231, 16
      %v250 = vrot.slane %v248, 1
      %v251 = vsel %vm239, %v246, %v250
      %v253 = vshrl.u32 %v208, 16
      %v255 = vshll.u32 %v208, 16
      %v257 = vrot.slane %v255, 1
      %v258 = vor.u32 %v253, %v257
      %v260 = vshll.u32 %v232, 16
      %v262 = vrot.slane %v260, 1
      %v263 = vsel %vm239, %v258, %v262
      %v265 = vshrl.u32 %v209, 16
      %v267 = vshll.u32 %v209, 16
      %v269 = vrot.slane %v267, 1
      %v270 = vor.u32 %v265, %v269
      %v272 = vshll.u32 %v233, 16
      %v274 = vrot.slane %v272, 1
      %v275 = vsel %vm239, %v270, %v274
      %v277 = vshrl.u32 %v210, 16
      %v279 = vshll.u32 %v210, 16
      %v281 = vrot.slane %v279, 1
      %v282 = vor.u32 %v277, %v281
      %v284 = vshll.u32 %v234, 16
      %v286 = vrot.slane %v284, 1
      %v287 = vsel %vm239, %v282, %v286
      %v289 = vshrl.u32 %v211, 16
      %v291 = vshll.u32 %v211, 16
      %v293 = vrot.slane %v291, 1
      %v294 = vor.u32 %v289, %v293
      %v296 = vshll.u32 %v235, 16
      %v298 = vrot.slane %v296, 1
      %v299 = vsel %vm239, %v294, %v298
      %v301 = vshrl.u32 %v212, 16
      %v303 = vshll.u32 %v212, 16
      %v305 = vrot.slane %v303, 1
      %v306 = vor.u32 %v301, %v305
      %v308 = vshll.u32 %v236, 16
      %v310 = vrot.slane %v308, 1
      %v311 = vsel %vm239, %v306, %v310
      %v313 = vshrl.u32 %v213, 16
      %v315 = vshll.u32 %v213, 16
      %v317 = vrot.slane %v315, 1
      %v318 = vor.u32 %v313, %v317
      %v320 = vshll.u32 %v237, 16
      %v322 = vrot.slane %v320, 1
      %v323 = vsel %vm239, %v318, %v322
      %v325 = vshrl.u32 %v214, 16
      %v327 = vshll.u32 %v214, 16
      %v329 = vrot.slane %v327, 1
      %v330 = vor.u32 %v325, %v329
      %v332 = vshll.u32 %v238, 16
      %v334 = vrot.slane %v332, 1
      %v335 = vsel %vm239, %v330, %v334
      %336 = vrot.lane.b32.xlu0 %v251, 8
      %v337 = vpop.permute.xlu0 %336
      %338 = vrot.lane.b32.xlu0 %v263, 8
      %v339 = vpop.permute.xlu0 %338
      %340 = vrot.lane.b32.xlu0 %v275, 8
      %v341 = vpop.permute.xlu0 %340
      %342 = vrot.lane.b32.xlu0 %v287, 8
      %v343 = vpop.permute.xlu0 %342
      %344 = vrot.lane.b32.xlu0 %v299, 8
      %v345 = vpop.permute.xlu0 %344
      %346 = vrot.lane.b32.xlu0 %v311, 8
      %v347 = vpop.permute.xlu0 %346
      %348 = vrot.lane.b32.xlu0 %v323, 8
      %v349 = vpop.permute.xlu0 %348
      %350 = vrot.lane.b32.xlu0 %v335, 8
      %v351 = vpop.permute.xlu0 %350
      %vm352 = vcmask 1046528
      %v353 = vrot.slane %v207, 1
      %v354 = vrot.slane %v231, 1
      %v355 = vsel %vm352, %v353, %v354
      %v356 = vrot.slane %v208, 1
      %v357 = vrot.slane %v232, 1
      %v358 = vsel %vm352, %v356, %v357
      %v359 = vrot.slane %v209, 1
      %v360 = vrot.slane %v233, 1
      %v361 = vsel %vm352, %v359, %v360
      %v362 = vrot.slane %v210, 1
      %v363 = vrot.slane %v234, 1
      %v364 = vsel %vm352, %v362, %v363
      %v365 = vrot.slane %v211, 1
      %v366 = vrot.slane %v235, 1
      %v367 = vsel %vm352, %v365, %v366
      %v368 = vrot.slane %v212, 1
      %v369 = vrot.slane %v236, 1
      %v370 = vsel %vm352, %v368, %v369
      %v371 = vrot.slane %v213, 1
      %v372 = vrot.slane %v237, 1
      %v373 = vsel %vm352, %v371, %v372
      %v374 = vrot.slane %v214, 1
      %v375 = vrot.slane %v238, 1
      %v376 = vsel %vm352, %v374, %v375
      %377 = vrot.lane.b32.xlu0 %v355, 16
      %v378 = vpop.permute.xlu0 %377
      %379 = vrot.lane.b32.xlu0 %v358, 16
      %v380 = vpop.permute.xlu0 %379
      %381 = vrot.lane.b32.xlu0 %v361, 16
      %v382 = vpop.permute.xlu0 %381
      %383 = vrot.lane.b32.xlu0 %v364, 16
      %v384 = vpop.permute.xlu0 %383
      %385 = vrot.lane.b32.xlu0 %v367, 16
      %v386 = vpop.permute.xlu0 %385
      %387 = vrot.lane.b32.xlu0 %v370, 16
      %v388 = vpop.permute.xlu0 %387
      %389 = vrot.lane.b32.xlu0 %v373, 16
      %v390 = vpop.permute.xlu0 %389
      %391 = vrot.lane.b32.xlu0 %v376, 16
      %v392 = vpop.permute.xlu0 %391
      %v395 = vunpack.c.l.b16 %v169
      %v396 = vunpack.c.l.b16 %v170
      %v397 = vpack.c.b16 %v396, %v395
      %398 = vrot.lane.b32.xlu0 %v208, 24
      %v399 = vpop.permute.xlu0 %398
      %400 = vrot.lane.b32.xlu0 %v209, 24
      %v401 = vpop.permute.xlu0 %400
      %402 = vrot.lane.b32.xlu0 %v210, 24
      %v403 = vpop.permute.xlu0 %402
      %404 = vrot.lane.b32.xlu0 %v211, 24
      %v405 = vpop.permute.xlu0 %404
      %406 = vrot.lane.b32.xlu0 %v212, 24
      %v407 = vpop.permute.xlu0 %406
      %408 = vrot.lane.b32.xlu0 %v213, 24
      %v409 = vpop.permute.xlu0 %408
      %410 = vrot.lane.b32.xlu0 %v214, 24
      %v411 = vpop.permute.xlu0 %410
      %412 = vrot.lane.b32.xlu0 %v397, 24
      %v413 = vpop.permute.xlu0 %412
      %v415 = vunpack.c.l.b16 %v171
      %v416 = vpack.c.b16 %v415, %v415
      %v418 = vshrl.u32 %v397, 16
      %v420 = vshll.u32 %v397, 16
      %v422 = vrot.slane %v420, 1
      %v423 = vor.u32 %v418, %v422
      %v425 = vshll.u32 %v416, 16
      %v427 = vrot.slane %v425, 1
      %v428 = vsel %vm239, %v423, %v427
      %429 = vrot.lane.b32.xlu0 %v263, 32
      %v430 = vpop.permute.xlu0 %429
      %431 = vrot.lane.b32.xlu0 %v275, 32
      %v432 = vpop.permute.xlu0 %431
      %433 = vrot.lane.b32.xlu0 %v287, 32
      %v434 = vpop.permute.xlu0 %433
      %435 = vrot.lane.b32.xlu0 %v299, 32
      %v436 = vpop.permute.xlu0 %435
      %437 = vrot.lane.b32.xlu0 %v311, 32
      %v438 = vpop.permute.xlu0 %437
      %439 = vrot.lane.b32.xlu0 %v323, 32
      %v440 = vpop.permute.xlu0 %439
      %441 = vrot.lane.b32.xlu0 %v335, 32
      %v442 = vpop.permute.xlu0 %441
      %443 = vrot.lane.b32.xlu0 %v428, 32
      %v444 = vpop.permute.xlu0 %443
      %v445 = vrot.slane %v397, 1
      %v446 = vrot.slane %v416, 1
      %v447 = vsel %vm352, %v445, %v446
      %448 = vrot.lane.b32.xlu0 %v358, 40
      %v449 = vpop.permute.xlu0 %448
      %450 = vrot.lane.b32.xlu0 %v361, 40
      %v451 = vpop.permute.xlu0 %450
      %452 = vrot.lane.b32.xlu0 %v364, 40
      %v453 = vpop.permute.xlu0 %452
      %454 = vrot.lane.b32.xlu0 %v367, 40
      %v455 = vpop.permute.xlu0 %454
      %456 = vrot.lane.b32.xlu0 %v370, 40
      %v457 = vpop.permute.xlu0 %456
      %458 = vrot.lane.b32.xlu0 %v373, 40
      %v459 = vpop.permute.xlu0 %458
      %460 = vrot.lane.b32.xlu0 %v376, 40
      %v461 = vpop.permute.xlu0 %460
      %462 = vrot.lane.b32.xlu0 %v447, 40
      %v463 = vpop.permute.xlu0 %462
      %v466 = vunpack.c.l.b16 %v172
      %v467 = vunpack.c.l.b16 %v173
      %v468 = vpack.c.b16 %v467, %v466
      %469 = vrot.lane.b32.xlu0 %v209, 48
      %v470 = vpop.permute.xlu0 %469
      %471 = vrot.lane.b32.xlu0 %v210, 48
      %v472 = vpop.permute.xlu0 %471
      %473 = vrot.lane.b32.xlu0 %v211, 48
      %v474 = vpop.permute.xlu0 %473
      %475 = vrot.lane.b32.xlu0 %v212, 48
      %v476 = vpop.permute.xlu0 %475
      %477 = vrot.lane.b32.xlu0 %v213, 48
      %v478 = vpop.permute.xlu0 %477
      %479 = vrot.lane.b32.xlu0 %v214, 48
      %v480 = vpop.permute.xlu0 %479
      %481 = vrot.lane.b32.xlu0 %v397, 48
      %v482 = vpop.permute.xlu0 %481
      %483 = vrot.lane.b32.xlu0 %v468, 48
      %v484 = vpop.permute.xlu0 %483
      %v486 = vunpack.c.l.b16 %v174
      %v487 = vpack.c.b16 %v486, %v486
      %v489 = vshrl.u32 %v468, 16
      %v491 = vshll.u32 %v468, 16
      %v493 = vrot.slane %v491, 1
      %v494 = vor.u32 %v489, %v493
      %v496 = vshll.u32 %v487, 16
      %v498 = vrot.slane %v496, 1
      %v499 = vsel %vm239, %v494, %v498
      %500 = vrot.lane.b32.xlu0 %v275, 56
      %v501 = vpop.permute.xlu0 %500
      %502 = vrot.lane.b32.xlu0 %v287, 56
      %v503 = vpop.permute.xlu0 %502
      %504 = vrot.lane.b32.xlu0 %v299, 56
      %v505 = vpop.permute.xlu0 %504
      %506 = vrot.lane.b32.xlu0 %v311, 56
      %v507 = vpop.permute.xlu0 %506
      %508 = vrot.lane.b32.xlu0 %v323, 56
      %v509 = vpop.permute.xlu0 %508
      %510 = vrot.lane.b32.xlu0 %v335, 56
      %v511 = vpop.permute.xlu0 %510
      %512 = vrot.lane.b32.xlu0 %v428, 56
      %v513 = vpop.permute.xlu0 %512
      %514 = vrot.lane.b32.xlu0 %v499, 56
      %v515 = vpop.permute.xlu0 %514
      %v516 = vrot.slane %v468, 1
      %v517 = vrot.slane %v487, 1
      %v518 = vsel %vm352, %v516, %v517
      %519 = vrot.lane.b32.xlu0 %v361, 64
      %v520 = vpop.permute.xlu0 %519
      %521 = vrot.lane.b32.xlu0 %v364, 64
      %v522 = vpop.permute.xlu0 %521
      %523 = vrot.lane.b32.xlu0 %v367, 64
      %v524 = vpop.permute.xlu0 %523
      %525 = vrot.lane.b32.xlu0 %v370, 64
      %v526 = vpop.permute.xlu0 %525
      %527 = vrot.lane.b32.xlu0 %v373, 64
      %v528 = vpop.permute.xlu0 %527
      %529 = vrot.lane.b32.xlu0 %v376, 64
      %v530 = vpop.permute.xlu0 %529
      %531 = vrot.lane.b32.xlu0 %v447, 64
      %v532 = vpop.permute.xlu0 %531
      %533 = vrot.lane.b32.xlu0 %v518, 64
      %v534 = vpop.permute.xlu0 %533
      %vm535 = vcmask 64512
      %v537 = vsel %vm535, %v207, %v337
      %v539 = vsel %vm535, %v208, %v339
      %v541 = vsel %vm535, %v209, %v341
      %v543 = vsel %vm535, %v210, %v343
      %v545 = vsel %vm535, %v211, %v345
      %v547 = vsel %vm535, %v212, %v347
      %v549 = vsel %vm535, %v213, %v349
      %v551 = vsel %vm535, %v214, %v351
      %vm552 = vcmask 130048
      %v554 = vsel %vm552, %v537, %v378
      %v556 = vsel %vm552, %v539, %v380
      %v558 = vsel %vm552, %v541, %v382
      %v560 = vsel %vm552, %v543, %v384
      %v562 = vsel %vm552, %v545, %v386
      %v564 = vsel %vm552, %v547, %v388
      %v566 = vsel %vm552, %v549, %v390
      %v568 = vsel %vm552, %v551, %v392
      %vm569 = vcmask 195584
      %v571 = vsel %vm569, %v554, %v399
      %v573 = vsel %vm569, %v556, %v401
      %v575 = vsel %vm569, %v558, %v403
      %v577 = vsel %vm569, %v560, %v405
      %v579 = vsel %vm569, %v562, %v407
      %v581 = vsel %vm569, %v564, %v409
      %v583 = vsel %vm569, %v566, %v411
      %v585 = vsel %vm569, %v568, %v413
      %vm586 = vcmask 261120
      %v588 = vsel %vm586, %v571, %v430
      %v590 = vsel %vm586, %v573, %v432
      %v592 = vsel %vm586, %v575, %v434
      %v594 = vsel %vm586, %v577, %v436
      %v596 = vsel %vm586, %v579, %v438
      %v598 = vsel %vm586, %v581, %v440
      %v600 = vsel %vm586, %v583, %v442
      %v602 = vsel %vm586, %v585, %v444
      %vm603 = vcmask 326656
      %v605 = vsel %vm603, %v588, %v449
      %v607 = vsel %vm603, %v590, %v451
      %v609 = vsel %vm603, %v592, %v453
      %v611 = vsel %vm603, %v594, %v455
      %v613 = vsel %vm603, %v596, %v457
      %v615 = vsel %vm603, %v598, %v459
      %v617 = vsel %vm603, %v600, %v461
      %v619 = vsel %vm603, %v602, %v463
      %vm620 = vcmask 392192
      %v622 = vsel %vm620, %v605, %v470
      %v624 = vsel %vm620, %v607, %v472
      %v626 = vsel %vm620, %v609, %v474
      %v628 = vsel %vm620, %v611, %v476
      %v630 = vsel %vm620, %v613, %v478
      %v632 = vsel %vm620, %v615, %v480
      %v634 = vsel %vm620, %v617, %v482
      %v636 = vsel %vm620, %v619, %v484
      %vm637 = vcmask 457728
      %v639 = vsel %vm637, %v622, %v501
      %v641 = vsel %vm637, %v624, %v503
      %v643 = vsel %vm637, %v626, %v505
      %v645 = vsel %vm637, %v628, %v507
      %v647 = vsel %vm637, %v630, %v509
      %v649 = vsel %vm637, %v632, %v511
      %v651 = vsel %vm637, %v634, %v513
      %v653 = vsel %vm637, %v636, %v515
      %vm654 = vcmask 523264
      %v656 = vsel %vm654, %v639, %v520
      %v658 = vsel %vm654, %v641, %v522
      %v660 = vsel %vm654, %v643, %v524
      %v662 = vsel %vm654, %v645, %v526
      %v664 = vsel %vm654, %v647, %v528
      %v666 = vsel %vm654, %v649, %v530
      %v668 = vsel %vm654, %v651, %v532
      %v670 = vsel %vm654, %v653, %v534
      %v671 = vld [vmem:[%s1] sm:$0xf]
      %v672 = vld [vmem:[%s1 + $0x4] sm:$0xf]
      %v673 = vld [vmem:[%s1 + $0x8] sm:$0xf]
      %v674 = vld [vmem:[%s1 + $0xc] sm:$0xf]
      %v675 = vld [vmem:[%s1 + $0x10] sm:$0xf]
      %v676 = vld [vmem:[%s1 + $0x14] sm:$0xf]
      %v677 = vld [vmem:[%s1 + $0x18] sm:$0xf]
      %v678 = vld [vmem:[%s1 + $0x1c] sm:$0xf]
      %v679 = vld [vmem:[%s1 + $0x20] sm:$0xf]
      %v689 = vunpack.c.l.b16 %v671
      %v690 = vunpack.c.l.b16 %v672
      %v691 = vunpack.c.l.b16 %v673
      %v692 = vunpack.c.l.b16 %v674
      %v693 = vunpack.c.l.b16 %v675
      %v694 = vunpack.c.l.b16 %v676
      %v695 = vunpack.c.l.b16 %v677
      %v696 = vunpack.c.l.b16 %v678
      %v697 = vunpack.c.l.b16 %v679
      %v698 = vpack.c.b16 %v690, %v689
      %v699 = vpack.c.b16 %v692, %v691
      %v700 = vpack.c.b16 %v694, %v693
      %v701 = vpack.c.b16 %v696, %v695
      %v702 = vpack.c.b16 %v697, %v697
      %vm707 = vcmask 588800
      %v708 = vsel %vm707, %v656, 0
      %v710 = vsel %vm707, %v658, 0
      %v712 = vsel %vm707, %v660, 0
      %v714 = vsel %vm707, %v662, 0
      %v716 = vsel %vm707, %v664, 0
      %v718 = vsel %vm707, %v666, 0
      %v720 = vsel %vm707, %v668, 0
      %v722 = vsel %vm707, %v670, 0
      %vm724 = vcmask 1043456
      %v726 = vsel %vm724, %v702, 0
      %728 = vmatpush.bf16.msra.mxu0 0
      %729 = vmatpush.bf16.msra.mxu0 0
      %730 = vmatpush.bf16.msra.mxu0 0
      %731 = vmatpush.bf16.msra.mxu0 %v726
      %732 = vmatpush.bf16.msra.mxu0 %v701
      %733 = vmatpush.bf16.msra.mxu0 %v700
      %734 = vmatpush.bf16.msra.mxu0 %v699
      %735 = vmatpush.bf16.msra.mxu0 %v698
      %736 = vmatmul.bf16.gmra.mxu0 %v708
      %v737 = vpop.f32.mrf.mxu0
      %v738 = vadd.f32 0.0, %v737
      %v739 = vpop.f32.mrf.mxu0
      %v740 = vadd.f32 0.0, %v739
      %741 = vmatmul.bf16.gmra.mxu0 %v710
      %v742 = vpop.f32.mrf.mxu0
      %v743 = vadd.f32 0.0, %v742
      %v744 = vpop.f32.mrf.mxu0
      %v745 = vadd.f32 0.0, %v744
      %746 = vmatmul.bf16.gmra.mxu0 %v712
      %v747 = vpop.f32.mrf.mxu0
      %v748 = vadd.f32 0.0, %v747
      %v749 = vpop.f32.mrf.mxu0
      %v750 = vadd.f32 0.0, %v749
      %751 = vmatmul.bf16.gmra.mxu0 %v714
      %v752 = vpop.f32.mrf.mxu0
      %v753 = vadd.f32 0.0, %v752
      %v754 = vpop.f32.mrf.mxu0
      %v755 = vadd.f32 0.0, %v754
      %756 = vmatmul.bf16.gmra.mxu0 %v716
      %v757 = vpop.f32.mrf.mxu0
      %v758 = vadd.f32 0.0, %v757
      %v759 = vpop.f32.mrf.mxu0
      %v760 = vadd.f32 0.0, %v759
      %761 = vmatmul.bf16.gmra.mxu0 %v718
      %v762 = vpop.f32.mrf.mxu0
      %v763 = vadd.f32 0.0, %v762
      %v764 = vpop.f32.mrf.mxu0
      %v765 = vadd.f32 0.0, %v764
      %766 = vmatmul.bf16.gmra.mxu0 %v720
      %v767 = vpop.f32.mrf.mxu0
      %v768 = vadd.f32 0.0, %v767
      %v769 = vpop.f32.mrf.mxu0
      %v770 = vadd.f32 0.0, %v769
      %771 = vmatmul.bf16.gmra.mxu0 %v722
      %v772 = vpop.f32.mrf.mxu0
      %v773 = vadd.f32 0.0, %v772
      %v774 = vpop.f32.mrf.mxu0
      %v775 = vadd.f32 0.0, %v774
      %776 = vdwg.mxu0
      %v777 = vpack.c.bf16 %v738, %v738
      %v778 = vpack.c.bf16 %v740, %v740
      %v779 = vpack.c.bf16 %v743, %v743
      %v780 = vpack.c.bf16 %v745, %v745
      %v781 = vpack.c.bf16 %v748, %v748
      %v782 = vpack.c.bf16 %v750, %v750
      %v783 = vpack.c.bf16 %v753, %v753
      %v784 = vpack.c.bf16 %v755, %v755
      %v785 = vpack.c.bf16 %v758, %v758
      %v786 = vpack.c.bf16 %v760, %v760
      %v787 = vpack.c.bf16 %v763, %v763
      %v788 = vpack.c.bf16 %v765, %v765
      %v789 = vpack.c.bf16 %v768, %v768
      %v790 = vpack.c.bf16 %v770, %v770
      %v791 = vpack.c.bf16 %v773, %v773
      %v792 = vpack.c.bf16 %v775, %v775
      %vm793 = vcmask 257024
      %794 = vst.msk [vmem:[%s143] sm:$0xf] %vm793, %v777
      %795 = vst.msk [vmem:[%s143 + $0x4] sm:$0xf] %vm793, %v778
      %796 = vst.msk [vmem:[%s143 + $0x8] sm:$0xf] %vm793, %v779
      %797 = vst.msk [vmem:[%s143 + $0xc] sm:$0xf] %vm793, %v780
      %798 = vst.msk [vmem:[%s143 + $0x10] sm:$0xf] %vm793, %v781
      %799 = vst.msk [vmem:[%s143 + $0x14] sm:$0xf] %vm793, %v782
      %800 = vst.msk [vmem:[%s143 + $0x18] sm:$0xf] %vm793, %v783
      %801 = vst.msk [vmem:[%s143 + $0x1c] sm:$0xf] %vm793, %v784
      %802 = vst.msk [vmem:[%s143 + $0x20] sm:$0xf] %vm793, %v785
      %803 = vst.msk [vmem:[%s143 + $0x24] sm:$0xf] %vm793, %v786
      %804 = vst.msk [vmem:[%s143 + $0x28] sm:$0xf] %vm793, %v787
      %805 = vst.msk [vmem:[%s143 + $0x2c] sm:$0xf] %vm793, %v788
      %806 = vst.msk [vmem:[%s143 + $0x30] sm:$0xf] %vm793, %v789
      %807 = vst.msk [vmem:[%s143 + $0x34] sm:$0xf] %vm793, %v790
      %808 = vst.msk [vmem:[%s143 + $0x38] sm:$0xf] %vm793, %v791
      %809 = vst.msk [vmem:[%s143 + $0x3c] sm:$0xf] %vm793, %v792
      %p810 = scmp.lt.s32.totalorder %s13, 3
      %s811 = scalar_select %p810, %s13, 3
      %s812 = smul.addr %s811, 16
      %s813 = smul.addr %s812, 4
      %s814 = scalar_lea.vmem %s2, %s813
      // Predicated region
      $region29: #{_lambda_.4} parent=27 // pred_check
        %p815 = pneg %p78
      $region30: #{_lambda_.4} parent=27 // pred_check_branch
        %817 = sbr.rel (%p815) target = $region32
      $region31: #{_lambda_.4} parent=27 // pred_region
        _
      $region32: #{_lambda_.4} parent=27 // pred_fallthru
        _
    $region28: #{_lambda_.4} parent=5 // pred_fallthru
      _
    %p818 = scmp.le.s32.totalorder 2, %s8
    // Predicated region
    $region33: #{_lambda_.4} parent=5 // pred_check
      %p819 = pneg %p818
    $region34: #{_lambda_.4} parent=5 // pred_check_branch
      %821 = sbr.rel (%p819) target = $region36
    $region35: #{_lambda_.4} parent=5 // pred_region
      %s822 = ssub.s32 %s8, 2
      // Predicated region
      $region37: #{_lambda_.4} parent=35 // pred_check
        %p823 = pneg %p84
      $region38: #{_lambda_.4} parent=35 // pred_check_branch
        %825 = sbr.rel (%p823) target = $region40
      $region39: #{_lambda_.4} parent=35 // pred_region
        %p826 = scmp.lt.s32.totalorder %s14, 3
        %s827 = scalar_select %p826, %s14, 3
        %s828 = smul.addr %s827, 16
        %s829 = smul.addr %s828, 4
        %s830 = scalar_lea.vmem %s2, %s829
      $region40: #{_lambda_.4} parent=35 // pred_fallthru
        _
    $region36: #{_lambda_.4} parent=5 // pred_fallthru
      _
  $region6: #{_lambda_.4} parent=0 // loop_footer
    %s12 = sadd.s32 1, %s8
  $region7: #{_lambda_.4} parent=0 // loop_footer_branch
    %7 = sbr.rel target = $region3
  $region8: #{_lambda_.4} parent=0 // loop_exit
    _

// kernel: _lambda_.5
$region0: #{_lambda_.5}
  #allocation0 [shape = 'u32[]', space=smem, size = 0x4, offset = 0x4, fixed_abs, tag = 'smem constant byte address 0x4 - core index']
  #allocation1 [shape = 'u32[72,128]{1,0:T(1,128)}', space=vmem, size = 0x9000, scoped, tag = 'internal scratch']
  %s0 = inlined_call_operand.vmem [shape: bf16[4,10,18,32], index: 0, kind: input, shape index: {}]
  %s1 = inlined_call_operand.vmem [shape: bf16[288,32], index: 1, kind: input, shape index: {}]
  %s2 = inlined_call_operand.vmem [shape: bf16[4,128,32], index: 2, kind: output, shape index: {0}]
  %s3 = inlined_call_operand.vmem [shape: f32[4,8,32], index: 3, kind: output, shape index: {1}]
  %4 = xla_tuple %s2, %s3
  %s5 = sld [smem:[#allocation0]]
  $region49: #{_lambda_.5} parent=0
    _
  %s7 = ssub.s32 1, %s5
  %s8 = scalar_select 0, %s7, %s5
  loop: start=0, step=1, limit=6
  $region2: #{_lambda_.5} parent=0 // loop_pre_header
    _
  $region3: #{_lambda_.5} parent=0 // loop_header
    %s10 = sphi 0, %s14
    %p11 = scmp.ge.s32.totalorder %s10, 6
    %s20 = sphi 0, %s22
    %s23 = sphi 0, %s20
    %s24 = sphi 0, %s23
    %s40 = sphi 0, %s24
    %s44 = sphi 0, %s44
    %s46 = sphi 0, %s44
    %s47 = sphi 0, %s46
    %s61 = sphi 0, %s47
    %s67 = sphi 0, %s69
    %s70 = sphi 0, %s67
    %s71 = sphi 0, %s70
    %s87 = sphi 0, %s71
    %s93 = sphi 0, %s95
    %s96 = sphi 0, %s93
    %s97 = sphi 0, %s96
    %s113 = sphi 0, %s97
  $region4: #{_lambda_.5} parent=0 // loop_header_branch
    %13 = sbr.rel (%p11) target = $region8
  $region5: #{_lambda_.5} parent=0 // loop_body
    %s15 = ssub.s32 %s10, 1
    %s16 = ssub.s32 %s10, 2
    %s17 = sadd.s32 %s10, 1
    %s18 = ssub.s32 %s10, %s17
    %p19 = scmp.eq.s32.totalorder %s18, 0
    %s21 = sadd.s32 %s20, 1
    %s22 = scalar_select %p19, %s20, %s21
    %p25 = pneg %p19
    %p26 = scmp.eq.s32.totalorder %s10, 3
    %p27 = por %p25, %p26
    %p28 = scmp.ne.s32.totalorder %s20, %s23
    %p29 = scmp.eq.s32.totalorder %s10, 0
    %p30 = por %p28, %p29
    %p31 = scmp.ne.s32.totalorder %s20, %s23
    %p32 = scmp.eq.s32.totalorder %s15, 3
    %p33 = por %p31, %p32
    %p34 = scmp.ne.s32.totalorder %s23, %s24
    %p35 = scmp.eq.s32.totalorder %s15, 0
    %p36 = por %p34, %p35
    %p37 = scmp.ne.s32.totalorder %s23, %s24
    %p38 = scmp.eq.s32.totalorder %s16, 3
    %p39 = por %p37, %p38
    %p41 = scmp.ne.s32.totalorder %s24, %s40
    %p42 = scmp.eq.s32.totalorder %s16, 0
    %p43 = por %p41, %p42
    %s45 = sadd.s32 %s44, 1
    %p48 = scmp.eq.s32.totalorder %s10, 3
    %p49 = scmp.ne.s32.totalorder %s44, %s46
    %p50 = scmp.eq.s32.totalorder %s10, 0
    %p51 = por %p49, %p50
    %p52 = scmp.ne.s32.totalorder %s44, %s46
    %p53 = scmp.eq.s32.totalorder %s15, 3
    %p54 = por %p52, %p53
    %p55 = scmp.ne.s32.totalorder %s46, %s47
    %p56 = scmp.eq.s32.totalorder %s15, 0
    %p57 = por %p55, %p56
    %p58 = scmp.ne.s32.totalorder %s46, %s47
    %p59 = scmp.eq.s32.totalorder %s16, 3
    %p60 = por %p58, %p59
    %p62 = scmp.ne.s32.totalorder %s47, %s61
    %p63 = scmp.eq.s32.totalorder %s16, 0
    %p64 = por %p62, %p63
    %s65 = ssub.s32 %s10, %s17
    %p66 = scmp.eq.s32.totalorder %s65, 0
    %s68 = sadd.s32 %s67, 1
    %s69 = scalar_select %p66, %s67, %s68
    %p72 = pneg %p66
    %p73 = scmp.eq.s32.totalorder %s10, 3
    %p74 = por %p72, %p73
    %p75 = scmp.ne.s32.totalorder %s67, %s70
    %p76 = scmp.eq.s32.totalorder %s10, 0
    %p77 = por %p75, %p76
    %p78 = scmp.ne.s32.totalorder %s67, %s70
    %p79 = scmp.eq.s32.totalorder %s15, 3
    %p80 = por %p78, %p79
    %p81 = scmp.ne.s32.totalorder %s70, %s71
    %p82 = scmp.eq.s32.totalorder %s15, 0
    %p83 = por %p81, %p82
    %p84 = scmp.ne.s32.totalorder %s70, %s71
    %p85 = scmp.eq.s32.totalorder %s16, 3
    %p86 = por %p84, %p85
    %p88 = scmp.ne.s32.totalorder %s71, %s87
    %p89 = scmp.eq.s32.totalorder %s16, 0
    %p90 = por %p88, %p89
    %s91 = ssub.s32 %s10, %s17
    %p92 = scmp.eq.s32.totalorder %s91, 0
    %s94 = sadd.s32 %s93, 1
    %s95 = scalar_select %p92, %s93, %s94
    %p98 = pneg %p92
    %p99 = scmp.eq.s32.totalorder %s10, 3
    %p100 = por %p98, %p99
    %p101 = scmp.ne.s32.totalorder %s93, %s96
    %p102 = scmp.eq.s32.totalorder %s10, 0
    %p103 = por %p101, %p102
    %p104 = scmp.ne.s32.totalorder %s93, %s96
    %p105 = scmp.eq.s32.totalorder %s15, 3
    %p106 = por %p104, %p105
    %p107 = scmp.ne.s32.totalorder %s96, %s97
    %p108 = scmp.eq.s32.totalorder %s15, 0
    %p109 = por %p107, %p108
    %p110 = scmp.ne.s32.totalorder %s96, %s97
    %p111 = scmp.eq.s32.totalorder %s16, 3
    %p112 = por %p110, %p111
    %p114 = scmp.ne.s32.totalorder %s97, %s113
    %p115 = scmp.eq.s32.totalorder %s16, 0
    %p116 = por %p114, %p115
    %p117 = scmp.le.s32.totalorder 1, %s10
    %p118 = scmp.lt.s32.totalorder %s10, 5
    %p119 = pnand %p117, %p118
    %p120 = pneg %p119
    // Predicated region
    $region9: #{_lambda_.5} parent=5 // pred_check
      _
    $region10: #{_lambda_.5} parent=5 // pred_check_branch
      %122 = sbr.rel (%p119) target = $region12
    $region11: #{_lambda_.5} parent=5 // pred_region
      %s123 = ssub.s32 %s10, 1
      // Predicated region
      $region13: #{_lambda_.5} parent=11 // pred_check
        %p124 = pneg %p57
      $region14: #{_lambda_.5} parent=11 // pred_check_branch
        %126 = sbr.rel (%p124) target = $region16
      $region15: #{_lambda_.5} parent=11 // pred_region
        _
      $region16: #{_lambda_.5} parent=11 // pred_fallthru
        _
    $region12: #{_lambda_.5} parent=5 // pred_fallthru
      _
    %p127 = scmp.lt.s32.totalorder %s10, 4
    // Predicated region
    $region17: #{_lambda_.5} parent=5 // pred_check
      %p128 = pneg %p127
    $region18: #{_lambda_.5} parent=5 // pred_check_branch
      %130 = sbr.rel (%p128) target = $region20
    $region19: #{_lambda_.5} parent=5 // pred_region
      // Predicated region
      $region21: #{_lambda_.5} parent=19 // pred_check
        %p131 = pneg %p30
      $region22: #{_lambda_.5} parent=19 // pred_check_branch
        %133 = sbr.rel (%p131) target = $region24
      $region23: #{_lambda_.5} parent=19 // pred_region
        %p134 = scmp.lt.s32.totalorder %s10, 3
        %s135 = scalar_select %p134, %s10, 3
        %s136 = smul.addr %s135, 30
        %s137 = smul.addr %s136, 4
        %s138 = scalar_lea.vmem %s0, %s137
      $region24: #{_lambda_.5} parent=19 // pred_fallthru
        _
    $region20: #{_lambda_.5} parent=5 // pred_fallthru
      _
    %p139 = scmp.le.s32.totalorder 1, %s10
    %p140 = scmp.lt.s32.totalorder %s10, 5
    %p141 = pnand %p139, %p140
    %p142 = pneg %p141
    // Predicated region
    $region25: #{_lambda_.5} parent=5 // pred_check
      _
    $region26: #{_lambda_.5} parent=5 // pred_check_branch
      %144 = sbr.rel (%p141) target = $region28
    $region27: #{_lambda_.5} parent=5 // pred_region
      %s145 = ssub.s32 %s10, 1
      %p146 = scmp.lt.s32.totalorder %s15, 3
      %s147 = scalar_select %p146, %s15, 3
      %s148 = smul.addr %s147, 30
      %s149 = smul.addr %s148, 4
      %s150 = scalar_lea.vmem %s0, %s149
      %p151 = pneg %p36
      %p152 = pneg %p33
      %p153 = pneg %p57
      %p154 = pneg %p54
      %p155 = pneg %p83
      %p156 = pneg %p80
      %p157 = scmp.lt.s32.totalorder %s15, 3
      %s158 = scalar_select %p157, %s15, 3
      %s159 = smul.addr %s158, 16
      %s160 = smul.addr %s159, 4
      %s161 = scalar_lea.vmem %s2, %s160
      %p162 = pneg %p109
      %p163 = pneg %p106
      %p164 = scmp.lt.s32.totalorder %s15, 3
      %s165 = scalar_select %p164, %s15, 3
      %s166 = smul.addr %s165, 8
      %s167 = scalar_lea.vmem %s3, %s166
      %p168 = scmp.lt.s32.totalorder %s15, 3
      %s169 = scalar_select %p168, %s15, 3
      %s170 = smul.addr %s169, 30
      %s171 = smul.addr %s170, 4
      %s172 = scalar_lea.vmem %s0, %s171
      %p173 = scmp.lt.s32.totalorder %s15, 3
      %s174 = scalar_select %p173, %s15, 3
      %s175 = smul.addr %s174, 16
      %s176 = smul.addr %s175, 4
      %s177 = scalar_lea.vmem %s2, %s176
      %p178 = scmp.lt.s32.totalorder %s15, 3
      %s179 = scalar_select %p178, %s15, 3
      %s180 = smul.addr %s179, 8
      %s181 = scalar_lea.vmem %s3, %s180
      %v183 = vld [vmem:[%s172] sm:$0xf]
      %v184 = vld [vmem:[%s172 + $0x4] sm:$0xf]
      %v185 = vld [vmem:[%s172 + $0x8] sm:$0x1]
      %v186 = vld [vmem:[%s172 + $0xc] sm:$0xf]
      %v187 = vld [vmem:[%s172 + $0x10] sm:$0xf]
      %v188 = vld [vmem:[%s172 + $0x14] sm:$0x1]
      %v189 = vld [vmem:[%s172 + $0x18] sm:$0xf]
      %v190 = vld [vmem:[%s172 + $0x1c] sm:$0xf]
      %v191 = vld [vmem:[%s172 + $0x20] sm:$0x1]
      %v192 = vld [vmem:[%s172 + $0x24] sm:$0xf]
      %v193 = vld [vmem:[%s172 + $0x28] sm:$0xf]
      %v194 = vld [vmem:[%s172 + $0x2c] sm:$0x1]
      %v195 = vld [vmem:[%s172 + $0x30] sm:$0xf]
      %v196 = vld [vmem:[%s172 + $0x34] sm:$0xf]
      %v197 = vld [vmem:[%s172 + $0x38] sm:$0x1]
      %v198 = vld [vmem:[%s172 + $0x3c] sm:$0xf]
      %v199 = vld [vmem:[%s172 + $0x40] sm:$0xf]
      %v200 = vld [vmem:[%s172 + $0x44] sm:$0x1]
      %v201 = vld [vmem:[%s172 + $0x48] sm:$0xf]
      %v202 = vld [vmem:[%s172 + $0x4c] sm:$0xf]
      %v203 = vld [vmem:[%s172 + $0x50] sm:$0x1]
      %v204 = vld [vmem:[%s172 + $0x54] sm:$0xf]
      %v205 = vld [vmem:[%s172 + $0x58] sm:$0xf]
      %v206 = vld [vmem:[%s172 + $0x5c] sm:$0x1]
      %v207 = vld [vmem:[%s172 + $0x60] sm:$0xf]
      %v208 = vld [vmem:[%s172 + $0x64] sm:$0xf]
      %v209 = vld [vmem:[%s172 + $0x68] sm:$0x1]
      %v210 = vld [vmem:[%s172 + $0x6c] sm:$0xf]
      %v211 = vld [vmem:[%s172 + $0x70] sm:$0xf]
      %v212 = vld [vmem:[%s172 + $0x74] sm:$0x1]
      %v229 = vunpack.c.l.b16 %v183
      %v230 = vunpack.c.l.b16 %v184
      %v231 = vunpack.c.l.b16 %v186
      %v232 = vunpack.c.l.b16 %v187
      %v233 = vunpack.c.l.b16 %v189
      %v234 = vunpack.c.l.b16 %v190
      %v235 = vunpack.c.l.b16 %v192
      %v236 = vunpack.c.l.b16 %v193
      %v237 = vunpack.c.l.b16 %v195
      %v238 = vunpack.c.l.b16 %v196
      %v239 = vunpack.c.l.b16 %v198
      %v240 = vunpack.c.l.b16 %v199
      %v241 = vunpack.c.l.b16 %v201
      %v242 = vunpack.c.l.b16 %v202
      %v243 = vunpack.c.l.b16 %v204
      %v244 = vunpack.c.l.b16 %v205
      %v245 = vpack.c.b16 %v230, %v229
      %v246 = vpack.c.b16 %v232, %v231
      %v247 = vpack.c.b16 %v234, %v233
      %v248 = vpack.c.b16 %v236, %v235
      %v249 = vpack.c.b16 %v238, %v237
      %v250 = vpack.c.b16 %v240, %v239
      %v251 = vpack.c.b16 %v242, %v241
      %v252 = vpack.c.b16 %v244, %v243
      %v261 = vunpack.c.l.b16 %v185
      %v262 = vunpack.c.l.b16 %v188
      %v263 = vunpack.c.l.b16 %v191
      %v264 = vunpack.c.l.b16 %v194
      %v265 = vunpack.c.l.b16 %v197
      %v266 = vunpack.c.l.b16 %v200
      %v267 = vunpack.c.l.b16 %v203
      %v268 = vunpack.c.l.b16 %v206
      %v269 = vpack.c.b16 %v261, %v261
      %v270 = vpack.c.b16 %v262, %v262
      %v271 = vpack.c.b16 %v263, %v263
      %v272 = vpack.c.b16 %v264, %v264
      %v273 = vpack.c.b16 %v265, %v265
      %v274 = vpack.c.b16 %v266, %v266
      %v275 = vpack.c.b16 %v267, %v267
      %v276 = vpack.c.b16 %v268, %v268
      %vm277 = vsmask.f32 7424
      %v279 = vshrl.u32 %v245, 16
      %v281 = vshll.u32 %v245, 16
      %v283 = vrot.slane %v281, 1
      %v284 = vor.u32 %v279, %v283
      %v286 = vshll.u32 %v269, 16
      %v288 = vrot.slane %v286, 1
      %v289 = vsel %vm277, %v284, %v288
      %v291 = vshrl.u32 %v246, 16
      %v293 = vshll.u32 %v246, 16
      %v295 = vrot.slane %v293, 1
      %v296 = vor.u32 %v291, %v295
      %v298 = vshll.u32 %v270, 16
      %v300 = vrot.slane %v298, 1
      %v301 = vsel %vm277, %v296, %v300
      %v303 = vshrl.u32 %v247, 16
      %v305 = vshll.u32 %v247, 16
      %v307 = vrot.slane %v305, 1
      %v308 = vor.u32 %v303, %v307
      %v310 = vshll.u32 %v271, 16
      %v312 = vrot.slane %v310, 1
      %v313 = vsel %vm277, %v308, %v312
      %v315 = vshrl.u32 %v248, 16
      %v317 = vshll.u32 %v248, 16
      %v319 = vrot.slane %v317, 1
      %v320 = vor.u32 %v315, %v319
      %v322 = vshll.u32 %v272, 16
      %v324 = vrot.slane %v322, 1
      %v325 = vsel %vm277, %v320, %v324
      %v327 = vshrl.u32 %v249, 16
      %v329 = vshll.u32 %v249, 16
      %v331 = vrot.slane %v329, 1
      %v332 = vor.u32 %v327, %v331
      %v334 = vshll.u32 %v273, 16
      %v336 = vrot.slane %v334, 1
      %v337 = vsel %vm277, %v332, %v336
      %v339 = vshrl.u32 %v250, 16
      %v341 = vshll.u32 %v250, 16
      %v343 = vrot.slane %v341, 1
      %v344 = vor.u32 %v339, %v343
      %v346 = vshll.u32 %v274, 16
      %v348 = vrot.slane %v346, 1
      %v349 = vsel %vm277, %v344, %v348
      %v351 = vshrl.u32 %v251, 16
      %v353 = vshll.u32 %v251, 16
      %v355 = vrot.slane %v353, 1
      %v356 = vor.u32 %v351, %v355
      %v358 = vshll.u32 %v275, 16
      %v360 = vrot.slane %v358, 1
      %v361 = vsel %vm277, %v356, %v360
      %v363 = vshrl.u32 %v252, 16
      %v365 = vshll.u32 %v252, 16
      %v367 = vrot.slane %v365, 1
      %v368 = vor.u32 %v363, %v367
      %v370 = vshll.u32 %v276, 16
      %v372 = vrot.slane %v370, 1
      %v373 = vsel %vm277, %v368, %v372
      %374 = vrot.lane.b32.xlu0 %v289, 32
      %v375 = vpop.permute.xlu0 %374
      %376 = vrot.lane.b32.xlu0 %v301, 32
      %v377 = vpop.permute.xlu0 %376
      %378 = vrot.lane.b32.xlu0 %v313, 32
      %v379 = vpop.permute.xlu0 %378
      %380 = vrot.lane.b32.xlu0 %v325, 32
      %v381 = vpop.permute.xlu0 %380
      %382 = vrot.lane.b32.xlu0 %v337, 32
      %v383 = vpop.permute.xlu0 %382
      %384 = vrot.lane.b32.xlu0 %v349, 32
      %v385 = vpop.permute.xlu0 %384
      %386 = vrot.lane.b32.xlu0 %v361, 32
      %v387 = vpop.permute.xlu0 %386
      %388 = vrot.lane.b32.xlu0 %v373, 32
      %v389 = vpop.permute.xlu0 %388
      %vm390 = vcmask 1046528
      %v391 = vrot.slane %v245, 1
      %v392 = vrot.slane %v269, 1
      %v393 = vsel %vm390, %v391, %v392
      %v394 = vrot.slane %v246, 1
      %v395 = vrot.slane %v270, 1
      %v396 = vsel %vm390, %v394, %v395
      %v397 = vrot.slane %v247, 1
      %v398 = vrot.slane %v271, 1
      %v399 = vsel %vm390, %v397, %v398
      %v400 = vrot.slane %v248, 1
      %v401 = vrot.slane %v272, 1
      %v402 = vsel %vm390, %v400, %v401
      %v403 = vrot.slane %v249, 1
      %v404 = vrot.slane %v273, 1
      %v405 = vsel %vm390, %v403, %v404
      %v406 = vrot.slane %v250, 1
      %v407 = vrot.slane %v274, 1
      %v408 = vsel %vm390, %v406, %v407
      %v409 = vrot.slane %v251, 1
      %v410 = vrot.slane %v275, 1
      %v411 = vsel %vm390, %v409, %v410
      %v412 = vrot.slane %v252, 1
      %v413 = vrot.slane %v276, 1
      %v414 = vsel %vm390, %v412, %v413
      %415 = vrot.lane.b32.xlu0 %v393, 64
      %v416 = vpop.permute.xlu0 %415
      %417 = vrot.lane.b32.xlu0 %v396, 64
      %v418 = vpop.permute.xlu0 %417
      %419 = vrot.lane.b32.xlu0 %v399, 64
      %v420 = vpop.permute.xlu0 %419
      %421 = vrot.lane.b32.xlu0 %v402, 64
      %v422 = vpop.permute.xlu0 %421
      %423 = vrot.lane.b32.xlu0 %v405, 64
      %v424 = vpop.permute.xlu0 %423
      %425 = vrot.lane.b32.xlu0 %v408, 64
      %v426 = vpop.permute.xlu0 %425
      %427 = vrot.lane.b32.xlu0 %v411, 64
      %v428 = vpop.permute.xlu0 %427
      %429 = vrot.lane.b32.xlu0 %v414, 64
      %v430 = vpop.permute.xlu0 %429
      %v433 = vunpack.c.l.b16 %v207
      %v434 = vunpack.c.l.b16 %v208
      %v435 = vpack.c.b16 %v434, %v433
      %436 = vrot.lane.b32.xlu0 %v246, 96
      %v437 = vpop.permute.xlu0 %436
      %438 = vrot.lane.b32.xlu0 %v247, 96
      %v439 = vpop.permute.xlu0 %438
      %440 = vrot.lane.b32.xlu0 %v248, 96
      %v441 = vpop.permute.xlu0 %440
      %442 = vrot.lane.b32.xlu0 %v249, 96
      %v443 = vpop.permute.xlu0 %442
      %444 = vrot.lane.b32.xlu0 %v250, 96
      %v445 = vpop.permute.xlu0 %444
      %446 = vrot.lane.b32.xlu0 %v251, 96
      %v447 = vpop.permute.xlu0 %446
      %448 = vrot.lane.b32.xlu0 %v252, 96
      %v449 = vpop.permute.xlu0 %448
      %450 = vrot.lane.b32.xlu0 %v435, 96
      %v451 = vpop.permute.xlu0 %450
      %v453 = vunpack.c.l.b16 %v209
      %v454 = vpack.c.b16 %v453, %v453
      %v456 = vshrl.u32 %v435, 16
      %v458 = vshll.u32 %v435, 16
      %v460 = vrot.slane %v458, 1
      %v461 = vor.u32 %v456, %v460
      %v463 = vshll.u32 %v454, 16
      %v465 = vrot.slane %v463, 1
      %v466 = vsel %vm277, %v461, %v465
      %v467 = vrot.slane %v435, 1
      %v468 = vrot.slane %v454, 1
      %v469 = vsel %vm390, %v467, %v468
      %470 = vrot.lane.b32.xlu0 %v396, 32
      %v471 = vpop.permute.xlu0 %470
      %472 = vrot.lane.b32.xlu0 %v399, 32
      %v473 = vpop.permute.xlu0 %472
      %474 = vrot.lane.b32.xlu0 %v402, 32
      %v475 = vpop.permute.xlu0 %474
      %476 = vrot.lane.b32.xlu0 %v405, 32
      %v477 = vpop.permute.xlu0 %476
      %478 = vrot.lane.b32.xlu0 %v408, 32
      %v479 = vpop.permute.xlu0 %478
      %480 = vrot.lane.b32.xlu0 %v411, 32
      %v481 = vpop.permute.xlu0 %480
      %482 = vrot.lane.b32.xlu0 %v414, 32
      %v483 = vpop.permute.xlu0 %482
      %484 = vrot.lane.b32.xlu0 %v469, 32
      %v485 = vpop.permute.xlu0 %484
      %v488 = vunpack.c.l.b16 %v210
      %v489 = vunpack.c.l.b16 %v211
      %v490 = vpack.c.b16 %v489, %v488
      %491 = vrot.lane.b32.xlu0 %v247, 64
      %v492 = vpop.permute.xlu0 %491
      %493 = vrot.lane.b32.xlu0 %v248, 64
      %v494 = vpop.permute.xlu0 %493
      %495 = vrot.lane.b32.xlu0 %v249, 64
      %v496 = vpop.permute.xlu0 %495
      %497 = vrot.lane.b32.xlu0 %v250, 64
      %v498 = vpop.permute.xlu0 %497
      %499 = vrot.lane.b32.xlu0 %v251, 64
      %v500 = vpop.permute.xlu0 %499
      %501 = vrot.lane.b32.xlu0 %v252, 64
      %v502 = vpop.permute.xlu0 %501
      %503 = vrot.lane.b32.xlu0 %v435, 64
      %v504 = vpop.permute.xlu0 %503
      %505 = vrot.lane.b32.xlu0 %v490, 64
      %v506 = vpop.permute.xlu0 %505
      %v508 = vunpack.c.l.b16 %v212
      %v509 = vpack.c.b16 %v508, %v508
      %v511 = vshrl.u32 %v490, 16
      %v513 = vshll.u32 %v490, 16
      %v515 = vrot.slane %v513, 1
      %v516 = vor.u32 %v511, %v515
      %v518 = vshll.u32 %v509, 16
      %v520 = vrot.slane %v518, 1
      %v521 = vsel %vm277, %v516, %v520
      %522 = vrot.lane.b32.xlu0 %v313, 96
      %v523 = vpop.permute.xlu0 %522
      %524 = vrot.lane.b32.xlu0 %v325, 96
      %v525 = vpop.permute.xlu0 %524
      %526 = vrot.lane.b32.xlu0 %v337, 96
      %v527 = vpop.permute.xlu0 %526
      %528 = vrot.lane.b32.xlu0 %v349, 96
      %v529 = vpop.permute.xlu0 %528
      %530 = vrot.lane.b32.xlu0 %v361, 96
      %v531 = vpop.permute.xlu0 %530
      %532 = vrot.lane.b32.xlu0 %v373, 96
      %v533 = vpop.permute.xlu0 %532
      %534 = vrot.lane.b32.xlu0 %v466, 96
      %v535 = vpop.permute.xlu0 %534
      %536 = vrot.lane.b32.xlu0 %v521, 96
      %v537 = vpop.permute.xlu0 %536
      %v538 = vrot.slane %v490, 1
      %v539 = vrot.slane %v509, 1
      %v540 = vsel %vm390, %v538, %v539
      %vm541 = vcmask 261120
      %v543 = vsel %vm541, %v245, %v375
      %v545 = vsel %vm541, %v246, %v377
      %v547 = vsel %vm541, %v247, %v379
      %v549 = vsel %vm541, %v248, %v381
      %v551 = vsel %vm541, %v249, %v383
      %v553 = vsel %vm541, %v250, %v385
      %v555 = vsel %vm541, %v251, %v387
      %v557 = vsel %vm541, %v252, %v389
      %vm558 = vcmask 523264
      %v560 = vsel %vm558, %v543, %v416
      %v562 = vsel %vm558, %v545, %v418
      %v564 = vsel %vm558, %v547, %v420
      %v566 = vsel %vm558, %v549, %v422
      %v568 = vsel %vm558, %v551, %v424
      %v570 = vsel %vm558, %v553, %v426
      %v572 = vsel %vm558, %v555, %v428
      %v574 = vsel %vm558, %v557, %v430
      %vm575 = vcmask 785408
      %v577 = vsel %vm575, %v560, %v437
      %v580 = vsel %vm575, %v562, %v439
      %v583 = vsel %vm575, %v564, %v441
      %v586 = vsel %vm575, %v566, %v443
      %v589 = vsel %vm575, %v568, %v445
      %v592 = vsel %vm575, %v570, %v447
      %v595 = vsel %vm575, %v572, %v449
      %v598 = vsel %vm575, %v574, %v451
      %v602 = vsel %vm541, %v301, %v471
      %v605 = vsel %vm541, %v313, %v473
      %v608 = vsel %vm541, %v325, %v475
      %v611 = vsel %vm541, %v337, %v477
      %v614 = vsel %vm541, %v349, %v479
      %v617 = vsel %vm541, %v361, %v481
      %v620 = vsel %vm541, %v373, %v483
      %v623 = vsel %vm541, %v466, %v485
      %v625 = vsel %vm558, %v602, %v492
      %v627 = vsel %vm558, %v605, %v494
      %v629 = vsel %vm558, %v608, %v496
      %v631 = vsel %vm558, %v611, %v498
      %v633 = vsel %vm558, %v614, %v500
      %v635 = vsel %vm558, %v617, %v502
      %v637 = vsel %vm558, %v620, %v504
      %v639 = vsel %vm558, %v623, %v506
      %v641 = vsel %vm575, %v625, %v523
      %v644 = vsel %vm575, %v627, %v525
      %v647 = vsel %vm575, %v629, %v527
      %v650 = vsel %vm575, %v631, %v529
      %v653 = vsel %vm575, %v633, %v531
      %v656 = vsel %vm575, %v635, %v533
      %v659 = vsel %vm575, %v637, %v535
      %v662 = vsel %vm575, %v639, %v537
      %v664 = vld [vmem:[%s1] sm:$0xf]
      %v665 = vld [vmem:[%s1 + $0x4] sm:$0xf]
      %v666 = vld [vmem:[%s1 + $0x8] sm:$0xf]
      %v667 = vld [vmem:[%s1 + $0xc] sm:$0xf]
      %v668 = vld [vmem:[%s1 + $0x10] sm:$0xf]
      %v669 = vld [vmem:[%s1 + $0x14] sm:$0xf]
      %v670 = vld [vmem:[%s1 + $0x18] sm:$0xf]
      %v671 = vld [vmem:[%s1 + $0x1c] sm:$0xf]
      %v672 = vld [vmem:[%s1 + $0x20] sm:$0xf]
      %v673 = vld [vmem:[%s1 + $0x24] sm:$0xf]
      %v674 = vld [vmem:[%s1 + $0x28] sm:$0xf]
      %v675 = vld [vmem:[%s1 + $0x2c] sm:$0xf]
      %v676 = vld [vmem:[%s1 + $0x30] sm:$0xf]
      %v677 = vld [vmem:[%s1 + $0x34] sm:$0xf]
      %v678 = vld [vmem:[%s1 + $0x38] sm:$0xf]
      %v679 = vld [vmem:[%s1 + $0x3c] sm:$0xf]
      %v680 = vld [vmem:[%s1 + $0x40] sm:$0xf]
      %v681 = vld [vmem:[%s1 + $0x44] sm:$0xf]
      %v682 = vld [vmem:[%s1 + $0x48] sm:$0xf]
      %v683 = vld [vmem:[%s1 + $0x4c] sm:$0xf]
      %v684 = vld [vmem:[%s1 + $0x50] sm:$0xf]
      %v685 = vld [vmem:[%s1 + $0x54] sm:$0xf]
      %v686 = vld [vmem:[%s1 + $0x58] sm:$0xf]
      %v687 = vld [vmem:[%s1 + $0x5c] sm:$0xf]
      %v688 = vld [vmem:[%s1 + $0x60] sm:$0xf]
      %v689 = vld [vmem:[%s1 + $0x64] sm:$0xf]
      %v690 = vld [vmem:[%s1 + $0x68] sm:$0xf]
      %v691 = vld [vmem:[%s1 + $0x6c] sm:$0xf]
      %v692 = vld [vmem:[%s1 + $0x70] sm:$0xf]
      %v693 = vld [vmem:[%s1 + $0x74] sm:$0xf]
      %v694 = vld [vmem:[%s1 + $0x78] sm:$0xf]
      %v695 = vld [vmem:[%s1 + $0x7c] sm:$0xf]
      %v696 = vld [vmem:[%s1 + $0x80] sm:$0xf]
      %v697 = vld [vmem:[%s1 + $0x84] sm:$0xf]
      %v698 = vld [vmem:[%s1 + $0x88] sm:$0xf]
      %v699 = vld [vmem:[%s1 + $0x8c] sm:$0xf]
      %v736 = vunpack.c.l.b16 %v664
      %v737 = vunpack.c.l.b16 %v665
      %v738 = vunpack.c.l.b16 %v666
      %v739 = vunpack.c.l.b16 %v667
      %v740 = vunpack.c.l.b16 %v668
      %v741 = vunpack.c.l.b16 %v669
      %v742 = vunpack.c.l.b16 %v670
      %v743 = vunpack.c.l.b16 %v671
      %v744 = vunpack.c.l.b16 %v672
      %v745 = vunpack.c.l.b16 %v673
      %v746 = vunpack.c.l.b16 %v674
      %v747 = vunpack.c.l.b16 %v675
      %v748 = vunpack.c.l.b16 %v676
      %v749 = vunpack.c.l.b16 %v677
      %v750 = vunpack.c.l.b16 %v678
      %v751 = vunpack.c.l.b16 %v679
      %v752 = vunpack.c.l.b16 %v680
      %v753 = vunpack.c.l.b16 %v681
      %v754 = vunpack.c.l.b16 %v682
      %v755 = vunpack.c.l.b16 %v683
      %v756 = vunpack.c.l.b16 %v684
      %v757 = vunpack.c.l.b16 %v685
      %v758 = vunpack.c.l.b16 %v686
      %v759 = vunpack.c.l.b16 %v687
      %v760 = vunpack.c.l.b16 %v688
      %v761 = vunpack.c.l.b16 %v689
      %v762 = vunpack.c.l.b16 %v690
      %v763 = vunpack.c.l.b16 %v691
      %v764 = vunpack.c.l.b16 %v692
      %v765 = vunpack.c.l.b16 %v693
      %v766 = vunpack.c.l.b16 %v694
      %v767 = vunpack.c.l.b16 %v695
      %v768 = vunpack.c.l.b16 %v696
      %v769 = vunpack.c.l.b16 %v697
      %v770 = vunpack.c.l.b16 %v698
      %v771 = vunpack.c.l.b16 %v699
      %v772 = vpack.c.b16 %v737, %v736
      %v773 = vpack.c.b16 %v739, %v738
      %v774 = vpack.c.b16 %v741, %v740
      %v775 = vpack.c.b16 %v743, %v742
      %v776 = vpack.c.b16 %v745, %v744
      %v777 = vpack.c.b16 %v747, %v746
      %v778 = vpack.c.b16 %v749, %v748
      %v779 = vpack.c.b16 %v751, %v750
      %v780 = vpack.c.b16 %v753, %v752
      %v781 = vpack.c.b16 %v755, %v754
      %v782 = vpack.c.b16 %v757, %v756
      %v783 = vpack.c.b16 %v759, %v758
      %v784 = vpack.c.b16 %v761, %v760
      %v785 = vpack.c.b16 %v763, %v762
      %v786 = vpack.c.b16 %v765, %v764
      %v787 = vpack.c.b16 %v767, %v766
      %v788 = vpack.c.b16 %v769, %v768
      %v789 = vpack.c.b16 %v771, %v770
      %v809 = vsel %vm541, %v399, 0
      %v812 = vsel %vm541, %v402, 0
      %v815 = vsel %vm541, %v405, 0
      %v818 = vsel %vm541, %v408, 0
      %v821 = vsel %vm541, %v411, 0
      %v824 = vsel %vm541, %v414, 0
      %v827 = vsel %vm541, %v469, 0
      %v830 = vsel %vm541, %v540, 0
      %832 = vmatpush.bf16.msra.mxu0 %v779
      %833 = vmatpush.bf16.msra.mxu0 %v778
      %834 = vmatpush.bf16.msra.mxu0 %v777
      %835 = vmatpush.bf16.msra.mxu0 %v776
      %836 = vmatpush.bf16.msra.mxu0 %v775
      %837 = vmatpush.bf16.msra.mxu0 %v774
      %838 = vmatpush.bf16.msra.mxu0 %v773
      %839 = vmatpush.bf16.msra.mxu0 %v772
      %840 = vmatmul.bf16.gmra.mxu0 %v577
      %v841 = vpop.f32.mrf.mxu0
      %v842 = vadd.f32 0.0, %v841
      %v843 = vpop.f32.mrf.mxu0
      %v844 = vadd.f32 0.0, %v843
      %845 = vmatmul.bf16.gmra.mxu0 %v580
      %v846 = vpop.f32.mrf.mxu0
      %v847 = vadd.f32 0.0, %v846
      %v848 = vpop.f32.mrf.mxu0
      %v849 = vadd.f32 0.0, %v848
      %850 = vmatmul.bf16.gmra.mxu0 %v583
      %v851 = vpop.f32.mrf.mxu0
      %v852 = vadd.f32 0.0, %v851
      %v853 = vpop.f32.mrf.mxu0
      %v854 = vadd.f32 0.0, %v853
      %855 = vmatmul.bf16.gmra.mxu0 %v586
      %v856 = vpop.f32.mrf.mxu0
      %v857 = vadd.f32 0.0, %v856
      %v858 = vpop.f32.mrf.mxu0
      %v859 = vadd.f32 0.0, %v858
      %860 = vmatmul.bf16.gmra.mxu0 %v589
      %v861 = vpop.f32.mrf.mxu0
      %v862 = vadd.f32 0.0, %v861
      %v863 = vpop.f32.mrf.mxu0
      %v864 = vadd.f32 0.0, %v863
      %865 = vmatmul.bf16.gmra.mxu0 %v592
      %v866 = vpop.f32.mrf.mxu0
      %v867 = vadd.f32 0.0, %v866
      %v868 = vpop.f32.mrf.mxu0
      %v869 = vadd.f32 0.0, %v868
      %870 = vmatmul.bf16.gmra.mxu0 %v595
      %v871 = vpop.f32.mrf.mxu0
      %v872 = vadd.f32 0.0, %v871
      %v873 = vpop.f32.mrf.mxu0
      %v874 = vadd.f32 0.0, %v873
      %875 = vmatmul.bf16.gmra.mxu0 %v598
      %v876 = vpop.f32.mrf.mxu0
      %v877 = vadd.f32 0.0, %v876
      %v878 = vpop.f32.mrf.mxu0
      %v879 = vadd.f32 0.0, %v878
      %880 = vdwg.mxu0
      %881 = vmatpush.bf16.msra.mxu0 %v787
      %882 = vmatpush.bf16.msra.mxu0 %v786
      %883 = vmatpush.bf16.msra.mxu0 %v785
      %884 = vmatpush.bf16.msra.mxu0 %v784
      %885 = vmatpush.bf16.msra.mxu0 %v783
      %886 = vmatpush.bf16.msra.mxu0 %v782
      %887 = vmatpush.bf16.msra.mxu0 %v781
      %888 = vmatpush.bf16.msra.mxu0 %v780
      %889 = vmatmul.bf16.gmra.mxu0 %v641
      %v890 = vpop.f32.mrf.mxu0
      %v891 = vadd.f32 %v842, %v890
      %v892 = vpop.f32.mrf.mxu0
      %v893 = vadd.f32 %v844, %v892
      %894 = vmatmul.bf16.gmra.mxu0 %v644
      %v895 = vpop.f32.mrf.mxu0
      %v896 = vadd.f32 %v847, %v895
      %v897 = vpop.f32.mrf.mxu0
      %v898 = vadd.f32 %v849, %v897
      %899 = vmatmul.bf16.gmra.mxu0 %v647
      %v900 = vpop.f32.mrf.mxu0
      %v901 = vadd.f32 %v852, %v900
      %v902 = vpop.f32.mrf.mxu0
      %v903 = vadd.f32 %v854, %v902
      %904 = vmatmul.bf16.gmra.mxu0 %v650
      %v905 = vpop.f32.mrf.mxu0
      %v906 = vadd.f32 %v857, %v905
      %v907 = vpop.f32.mrf.mxu0
      %v908 = vadd.f32 %v859, %v907
      %909 = vmatmul.bf16.gmra.mxu0 %v653
      %v910 = vpop.f32.mrf.mxu0
      %v911 = vadd.f32 %v862, %v910
      %v912 = vpop.f32.mrf.mxu0
      %v913 = vadd.f32 %v864, %v912
      %914 = vmatmul.bf16.gmra.mxu0 %v656
      %v915 = vpop.f32.mrf.mxu0
      %v916 = vadd.f32 %v867, %v915
      %v917 = vpop.f32.mrf.mxu0
      %v918 = vadd.f32 %v869, %v917
      %919 = vmatmul.bf16.gmra.mxu0 %v659
      %v920 = vpop.f32.mrf.mxu0
      %v921 = vadd.f32 %v872, %v920
      %v922 = vpop.f32.mrf.mxu0
      %v923 = vadd.f32 %v874, %v922
      %924 = vmatmul.bf16.gmra.mxu0 %v662
      %v925 = vpop.f32.mrf.mxu0
      %v926 = vadd.f32 %v877, %v925
      %v927 = vpop.f32.mrf.mxu0
      %v928 = vadd.f32 %v879, %v927
      %929 = vdwg.mxu0
      %930 = vmatpush.bf16.msra.mxu0 0
      %931 = vmatpush.bf16.msra.mxu0 0
      %932 = vmatpush.bf16.msra.mxu0 0
      %933 = vmatpush.bf16.msra.mxu0 0
      %934 = vmatpush.bf16.msra.mxu0 0
      %935 = vmatpush.bf16.msra.mxu0 0
      %936 = vmatpush.bf16.msra.mxu0 %v789
      %937 = vmatpush.bf16.msra.mxu0 %v788
      %938 = vmatmul.bf16.gmra.mxu0 %v809
      %v939 = vpop.f32.mrf.mxu0
      %v940 = vadd.f32 %v891, %v939
      %v941 = vpop.f32.mrf.mxu0
      %v942 = vadd.f32 %v893, %v941
      %943 = vmatmul.bf16.gmra.mxu0 %v812
      %v944 = vpop.f32.mrf.mxu0
      %v945 = vadd.f32 %v896, %v944
      %v946 = vpop.f32.mrf.mxu0
      %v947 = vadd.f32 %v898, %v946
      %948 = vmatmul.bf16.gmra.mxu0 %v815
      %v949 = vpop.f32.mrf.mxu0
      %v950 = vadd.f32 %v901, %v949
      %v951 = vpop.f32.mrf.mxu0
      %v952 = vadd.f32 %v903, %v951
      %953 = vmatmul.bf16.gmra.mxu0 %v818
      %v954 = vpop.f32.mrf.mxu0
      %v955 = vadd.f32 %v906, %v954
      %v956 = vpop.f32.mrf.mxu0
      %v957 = vadd.f32 %v908, %v956
      %958 = vmatmul.bf16.gmra.mxu0 %v821
      %v959 = vpop.f32.mrf.mxu0
      %v960 = vadd.f32 %v911, %v959
      %v961 = vpop.f32.mrf.mxu0
      %v962 = vadd.f32 %v913, %v961
      %963 = vmatmul.bf16.gmra.mxu0 %v824
      %v964 = vpop.f32.mrf.mxu0
      %v965 = vadd.f32 %v916, %v964
      %v966 = vpop.f32.mrf.mxu0
      %v967 = vadd.f32 %v918, %v966
      %968 = vmatmul.bf16.gmra.mxu0 %v827
      %v969 = vpop.f32.mrf.mxu0
      %v970 = vadd.f32 %v921, %v969
      %v971 = vpop.f32.mrf.mxu0
      %v972 = vadd.f32 %v923, %v971
      %973 = vmatmul.bf16.gmra.mxu0 %v830
      %v974 = vpop.f32.mrf.mxu0
      %v975 = vadd.f32 %v926, %v974
      %v976 = vpop.f32.mrf.mxu0
      %v977 = vadd.f32 %v928, %v976
      %978 = vdwg.mxu0
      %v979 = vsel %vm541, %v940, 0.0
      %v980 = vsel %vm541, %v942, 0.0
      %v981 = vadd.f32 %v979, %v980
      %v982 = vsel %vm541, %v945, 0.0
      %v983 = vadd.f32 %v981, %v982
      %v984 = vsel %vm541, %v947, 0.0
      %v985 = vadd.f32 %v983, %v984
      %v986 = vsel %vm541, %v950, 0.0
      %v987 = vadd.f32 %v985, %v986
      %v988 = vsel %vm541, %v952, 0.0
      %v989 = vadd.f32 %v987, %v988
      %v990 = vsel %vm541, %v955, 0.0
      %v991 = vadd.f32 %v989, %v990
      %v992 = vsel %vm541, %v957, 0.0
      %v993 = vadd.f32 %v991, %v992
      %v994 = vsel %vm541, %v960, 0.0
      %v995 = vadd.f32 %v993, %v994
      %v996 = vsel %vm541, %v962, 0.0
      %v997 = vadd.f32 %v995, %v996
      %v998 = vsel %vm541, %v965, 0.0
      %v999 = vadd.f32 %v997, %v998
      %v1000 = vsel %vm541, %v967, 0.0
      %v1001 = vadd.f32 %v999, %v1000
      %v1002 = vsel %vm541, %v970, 0.0
      %v1003 = vadd.f32 %v1001, %v1002
      %v1004 = vsel %vm541, %v972, 0.0
      %v1005 = vadd.f32 %v1003, %v1004
      %v1006 = vsel %vm541, %v975, 0.0
      %v1007 = vadd.f32 %v1005, %v1006
      %v1008 = vsel %vm541, %v977, 0.0
      %v1009 = vadd.f32 %v1007, %v1008
      %v1010 = vrot.slane %v1009, 4
      %v1011 = vadd.f32 %v1009, %v1010
      %v1012 = vrot.slane %v1011, 2
      %v1013 = vadd.f32 %v1011, %v1012
      %v1014 = vrot.slane %v1013, 1
      %v1015 = vadd.f32 %v1013, %v1014
      %v1016 = vmul.f32 %v940, %v940
      %v1017 = vmul.f32 %v942, %v942
      %v1018 = vmul.f32 %v945, %v945
      %v1019 = vmul.f32 %v947, %v947
      %v1020 = vmul.f32 %v950, %v950
      %v1021 = vmul.f32 %v952, %v952
      %v1022 = vmul.f32 %v955, %v955
      %v1023 = vmul.f32 %v957, %v957
      %v1024 = vmul.f32 %v960, %v960
      %v1025 = vmul.f32 %v962, %v962
      %v1026 = vmul.f32 %v965, %v965
      %v1027 = vmul.f32 %v967, %v967
      %v1028 = vmul.f32 %v970, %v970
      %v1029 = vmul.f32 %v972, %v972
      %v1030 = vmul.f32 %v975, %v975
      %v1031 = vmul.f32 %v977, %v977
      %v1032 = vsel %vm541, %v1016, 0.0
      %v1033 = vsel %vm541, %v1017, 0.0
      %v1034 = vadd.f32 %v1032, %v1033
      %v1035 = vsel %vm541, %v1018, 0.0
      %v1036 = vadd.f32 %v1034, %v1035
      %v1037 = vsel %vm541, %v1019, 0.0
      %v1038 = vadd.f32 %v1036, %v1037
      %v1039 = vsel %vm541, %v1020, 0.0
      %v1040 = vadd.f32 %v1038, %v1039
      %v1041 = vsel %vm541, %v1021, 0.0
      %v1042 = vadd.f32 %v1040, %v1041
      %v1043 = vsel %vm541, %v1022, 0.0
      %v1044 = vadd.f32 %v1042, %v1043
      %v1045 = vsel %vm541, %v1023, 0.0
      %v1046 = vadd.f32 %v1044, %v1045
      %v1047 = vsel %vm541, %v1024, 0.0
      %v1048 = vadd.f32 %v1046, %v1047
      %v1049 = vsel %vm541, %v1025, 0.0
      %v1050 = vadd.f32 %v1048, %v1049
      %v1051 = vsel %vm541, %v1026, 0.0
      %v1052 = vadd.f32 %v1050, %v1051
      %v1053 = vsel %vm541, %v1027, 0.0
      %v1054 = vadd.f32 %v1052, %v1053
      %v1055 = vsel %vm541, %v1028, 0.0
      %v1056 = vadd.f32 %v1054, %v1055
      %v1057 = vsel %vm541, %v1029, 0.0
      %v1058 = vadd.f32 %v1056, %v1057
      %v1059 = vsel %vm541, %v1030, 0.0
      %v1060 = vadd.f32 %v1058, %v1059
      %v1061 = vsel %vm541, %v1031, 0.0
      %v1062 = vadd.f32 %v1060, %v1061
      %v1063 = vrot.slane %v1062, 4
      %v1064 = vadd.f32 %v1062, %v1063
      %v1065 = vrot.slane %v1064, 2
      %v1066 = vadd.f32 %v1064, %v1065
      %v1067 = vrot.slane %v1066, 1
      %v1068 = vadd.f32 %v1066, %v1067
      %vm1069 = vcmask 253952
      %1070 = vst.msk [vmem:[%s181] sm:$0x1] %vm1069, %v1015
      %1071 = vst.msk [vmem:[%s181 + $0x1] sm:$0x1] %vm1069, %v1068
      %vm1072 = vcmask 259072
      %1073 = vst.msk [vmem:[%s181 + $0x2] sm:$0x3f] %vm1072, 0.0
      %v1074 = vpack.c.bf16 %v940, %v940
      %v1075 = vpack.c.bf16 %v942, %v942
      %v1076 = vpack.c.bf16 %v945, %v945
      %v1077 = vpack.c.bf16 %v947, %v947
      %v1078 = vpack.c.bf16 %v950, %v950
      %v1079 = vpack.c.bf16 %v952, %v952
      %v1080 = vpack.c.bf16 %v955, %v955
      %v1081 = vpack.c.bf16 %v957, %v957
      %v1082 = vpack.c.bf16 %v960, %v960
      %v1083 = vpack.c.bf16 %v962, %v962
      %v1084 = vpack.c.bf16 %v965, %v965
      %v1085 = vpack.c.bf16 %v967, %v967
      %v1086 = vpack.c.bf16 %v970, %v970
      %v1087 = vpack.c.bf16 %v972, %v972
      %v1088 = vpack.c.bf16 %v975, %v975
      %v1089 = vpack.c.bf16 %v977, %v977
      %vm1090 = vcmask 257024
      %1091 = vst.msk [vmem:[%s177] sm:$0xf] %vm1090, %v1074
      %1092 = vst.msk [vmem:[%s177 + $0x4] sm:$0xf] %vm1090, %v1075
      %1093 = vst.msk [vmem:[%s177 + $0x8] sm:$0xf] %vm1090, %v1076
      %1094 = vst.msk [vmem:[%s177 + $0xc] sm:$0xf] %vm1090, %v1077
      %1095 = vst.msk [vmem:[%s177 + $0x10] sm:$0xf] %vm1090, %v1078
      %1096 = vst.msk [vmem:[%s177 + $0x14] sm:$0xf] %vm1090, %v1079
      %1097 = vst.msk [vmem:[%s177 + $0x18] sm:$0xf] %vm1090, %v1080
      %1098 = vst.msk [vmem:[%s177 + $0x1c] sm:$0xf] %vm1090, %v1081
      %1099 = vst.msk [vmem:[%s177 + $0x20] sm:$0xf] %vm1090, %v1082
      %1100 = vst.msk [vmem:[%s177 + $0x24] sm:$0xf] %vm1090, %v1083
      %1101 = vst.msk [vmem:[%s177 + $0x28] sm:$0xf] %vm1090, %v1084
      %1102 = vst.msk [vmem:[%s177 + $0x2c] sm:$0xf] %vm1090, %v1085
      %1103 = vst.msk [vmem:[%s177 + $0x30] sm:$0xf] %vm1090, %v1086
      %1104 = vst.msk [vmem:[%s177 + $0x34] sm:$0xf] %vm1090, %v1087
      %1105 = vst.msk [vmem:[%s177 + $0x38] sm:$0xf] %vm1090, %v1088
      %1106 = vst.msk [vmem:[%s177 + $0x3c] sm:$0xf] %vm1090, %v1089
      %p1107 = scmp.lt.s32.totalorder %s15, 3
      %s1108 = scalar_select %p1107, %s15, 3
      %s1109 = smul.addr %s1108, 16
      %s1110 = smul.addr %s1109, 4
      %s1111 = scalar_lea.vmem %s2, %s1110
      %p1112 = scmp.lt.s32.totalorder %s15, 3
      %s1113 = scalar_select %p1112, %s15, 3
      %s1114 = smul.addr %s1113, 8
      %s1115 = scalar_lea.vmem %s3, %s1114
      // Predicated region
      $region29: #{_lambda_.5} parent=27 // pred_check
        %p1116 = pneg %p80
      $region30: #{_lambda_.5} parent=27 // pred_check_branch
        %1118 = sbr.rel (%p1116) target = $region32
      $region31: #{_lambda_.5} parent=27 // pred_region
        _
      $region32: #{_lambda_.5} parent=27 // pred_fallthru
        _
      // Predicated region
      $region33: #{_lambda_.5} parent=27 // pred_check
        %p1119 = pneg %p106
      $region34: #{_lambda_.5} parent=27 // pred_check_branch
        %1121 = sbr.rel (%p1119) target = $region36
      $region35: #{_lambda_.5} parent=27 // pred_region
        _
      $region36: #{_lambda_.5} parent=27 // pred_fallthru
        _
    $region28: #{_lambda_.5} parent=5 // pred_fallthru
      _
    %p1122 = scmp.le.s32.totalorder 2, %s10
    // Predicated region
    $region37: #{_lambda_.5} parent=5 // pred_check
      %p1123 = pneg %p1122
    $region38: #{_lambda_.5} parent=5 // pred_check_branch
      %1125 = sbr.rel (%p1123) target = $region40
    $region39: #{_lambda_.5} parent=5 // pred_region
      %s1126 = ssub.s32 %s10, 2
      // Predicated region
      $region41: #{_lambda_.5} parent=39 // pred_check
        %p1127 = pneg %p86
      $region42: #{_lambda_.5} parent=39 // pred_check_branch
        %1129 = sbr.rel (%p1127) target = $region44
      $region43: #{_lambda_.5} parent=39 // pred_region
        %p1130 = scmp.lt.s32.totalorder %s16, 3
        %s1131 = scalar_select %p1130, %s16, 3
        %s1132 = smul.addr %s1131, 16
        %s1133 = smul.addr %s1132, 4
        %s1134 = scalar_lea.vmem %s2, %s1133
      $region44: #{_lambda_.5} parent=39 // pred_fallthru
        _
      // Predicated region
      $region45: #{_lambda_.5} parent=39 // pred_check
        %p1135 = pneg %p112
      $region46: #{_lambda_.5} parent=39 // pred_check_branch
        %1137 = sbr.rel (%p1135) target = $region48
      $region47: #{_lambda_.5} parent=39 // pred_region
        %p1138 = scmp.lt.s32.totalorder %s16, 3
        %s1139 = scalar_select %p1138, %s16, 3
        %s1140 = smul.addr %s1139, 8
        %s1141 = scalar_lea.vmem %s3, %s1140
      $region48: #{_lambda_.5} parent=39 // pred_fallthru
        _
    $region40: #{_lambda_.5} parent=5 // pred_fallthru
      _
  $region6: #{_lambda_.5} parent=0 // loop_footer
    %s14 = sadd.s32 1, %s10
  $region7: #{_lambda_.5} parent=0 // loop_footer_branch
    %9 = sbr.rel target = $region3
  $region8: #{_lambda_.5} parent=0 // loop_exit
    _

// kernel: _lambda_.7
$region0: #{_lambda_.7}
  #allocation0 [shape = 'u32[]', space=smem, size = 0x4, offset = 0x4, fixed_abs, tag = 'smem constant byte address 0x4 - core index']
  #allocation1 [shape = 'u32[72,128]{1,0:T(1,128)}', space=vmem, size = 0x9000, scoped, tag = 'internal scratch']
  %s0 = inlined_call_operand.vmem [shape: bf16[4,10,18,32], index: 0, kind: input, shape index: {}]
  %s1 = inlined_call_operand.vmem [shape: bf16[288,4], index: 1, kind: input, shape index: {}]
  %s2 = inlined_call_operand.vmem [shape: f32[4,128,4], index: 2, kind: output, shape index: {}]
  %s3 = sld [smem:[#allocation0]]
  $region41: #{_lambda_.7} parent=0
    _
  %s5 = ssub.s32 1, %s3
  %s6 = scalar_select 0, %s5, %s3
  loop: start=0, step=1, limit=6
  $region2: #{_lambda_.7} parent=0 // loop_pre_header
    _
  $region3: #{_lambda_.7} parent=0 // loop_header
    %s8 = sphi 0, %s12
    %p9 = scmp.ge.s32.totalorder %s8, 6
    %s18 = sphi 0, %s20
    %s21 = sphi 0, %s18
    %s22 = sphi 0, %s21
    %s38 = sphi 0, %s22
    %s42 = sphi 0, %s42
    %s44 = sphi 0, %s42
    %s45 = sphi 0, %s44
    %s59 = sphi 0, %s45
    %s65 = sphi 0, %s67
    %s68 = sphi 0, %s65
    %s69 = sphi 0, %s68
    %s85 = sphi 0, %s69
  $region4: #{_lambda_.7} parent=0 // loop_header_branch
    %11 = sbr.rel (%p9) target = $region8
  $region5: #{_lambda_.7} parent=0 // loop_body
    %s13 = ssub.s32 %s8, 1
    %s14 = ssub.s32 %s8, 2
    %s15 = sadd.s32 %s8, 1
    %s16 = ssub.s32 %s8, %s15
    %p17 = scmp.eq.s32.totalorder %s16, 0
    %s19 = sadd.s32 %s18, 1
    %s20 = scalar_select %p17, %s18, %s19
    %p23 = pneg %p17
    %p24 = scmp.eq.s32.totalorder %s8, 3
    %p25 = por %p23, %p24
    %p26 = scmp.ne.s32.totalorder %s18, %s21
    %p27 = scmp.eq.s32.totalorder %s8, 0
    %p28 = por %p26, %p27
    %p29 = scmp.ne.s32.totalorder %s18, %s21
    %p30 = scmp.eq.s32.totalorder %s13, 3
    %p31 = por %p29, %p30
    %p32 = scmp.ne.s32.totalorder %s21, %s22
    %p33 = scmp.eq.s32.totalorder %s13, 0
    %p34 = por %p32, %p33
    %p35 = scmp.ne.s32.totalorder %s21, %s22
    %p36 = scmp.eq.s32.totalorder %s14, 3
    %p37 = por %p35, %p36
    %p39 = scmp.ne.s32.totalorder %s22, %s38
    %p40 = scmp.eq.s32.totalorder %s14, 0
    %p41 = por %p39, %p40
    %s43 = sadd.s32 %s42, 1
    %p46 = scmp.eq.s32.totalorder %s8, 3
    %p47 = scmp.ne.s32.totalorder %s42, %s44
    %p48 = scmp.eq.s32.totalorder %s8, 0
    %p49 = por %p47, %p48
    %p50 = scmp.ne.s32.totalorder %s42, %s44
    %p51 = scmp.eq.s32.totalorder %s13, 3
    %p52 = por %p50, %p51
    %p53 = scmp.ne.s32.totalorder %s44, %s45
    %p54 = scmp.eq.s32.totalorder %s13, 0
    %p55 = por %p53, %p54
    %p56 = scmp.ne.s32.totalorder %s44, %s45
    %p57 = scmp.eq.s32.totalorder %s14, 3
    %p58 = por %p56, %p57
    %p60 = scmp.ne.s32.totalorder %s45, %s59
    %p61 = scmp.eq.s32.totalorder %s14, 0
    %p62 = por %p60, %p61
    %s63 = ssub.s32 %s8, %s15
    %p64 = scmp.eq.s32.totalorder %s63, 0
    %s66 = sadd.s32 %s65, 1
    %s67 = scalar_select %p64, %s65, %s66
    %p70 = pneg %p64
    %p71 = scmp.eq.s32.totalorder %s8, 3
    %p72 = por %p70, %p71
    %p73 = scmp.ne.s32.totalorder %s65, %s68
    %p74 = scmp.eq.s32.totalorder %s8, 0
    %p75 = por %p73, %p74
    %p76 = scmp.ne.s32.totalorder %s65, %s68
    %p77 = scmp.eq.s32.totalorder %s13, 3
    %p78 = por %p76, %p77
    %p79 = scmp.ne.s32.totalorder %s68, %s69
    %p80 = scmp.eq.s32.totalorder %s13, 0
    %p81 = por %p79, %p80
    %p82 = scmp.ne.s32.totalorder %s68, %s69
    %p83 = scmp.eq.s32.totalorder %s14, 3
    %p84 = por %p82, %p83
    %p86 = scmp.ne.s32.totalorder %s69, %s85
    %p87 = scmp.eq.s32.totalorder %s14, 0
    %p88 = por %p86, %p87
    %p89 = scmp.le.s32.totalorder 1, %s8
    %p90 = scmp.lt.s32.totalorder %s8, 5
    %p91 = pnand %p89, %p90
    %p92 = pneg %p91
    // Predicated region
    $region9: #{_lambda_.7} parent=5 // pred_check
      _
    $region10: #{_lambda_.7} parent=5 // pred_check_branch
      %94 = sbr.rel (%p91) target = $region12
    $region11: #{_lambda_.7} parent=5 // pred_region
      %s95 = ssub.s32 %s8, 1
      // Predicated region
      $region13: #{_lambda_.7} parent=11 // pred_check
        %p96 = pneg %p55
      $region14: #{_lambda_.7} parent=11 // pred_check_branch
        %98 = sbr.rel (%p96) target = $region16
      $region15: #{_lambda_.7} parent=11 // pred_region
        _
      $region16: #{_lambda_.7} parent=11 // pred_fallthru
        _
    $region12: #{_lambda_.7} parent=5 // pred_fallthru
      _
    %p99 = scmp.lt.s32.totalorder %s8, 4
    // Predicated region
    $region17: #{_lambda_.7} parent=5 // pred_check
      %p100 = pneg %p99
    $region18: #{_lambda_.7} parent=5 // pred_check_branch
      %102 = sbr.rel (%p100) target = $region20
    $region19: #{_lambda_.7} parent=5 // pred_region
      // Predicated region
      $region21: #{_lambda_.7} parent=19 // pred_check
        %p103 = pneg %p28
      $region22: #{_lambda_.7} parent=19 // pred_check_branch
        %105 = sbr.rel (%p103) target = $region24
      $region23: #{_lambda_.7} parent=19 // pred_region
        %p106 = scmp.lt.s32.totalorder %s8, 3
        %s107 = scalar_select %p106, %s8, 3
        %s108 = smul.addr %s107, 30
        %s109 = smul.addr %s108, 4
        %s110 = scalar_lea.vmem %s0, %s109
      $region24: #{_lambda_.7} parent=19 // pred_fallthru
        _
    $region20: #{_lambda_.7} parent=5 // pred_fallthru
      _
    %p111 = scmp.le.s32.totalorder 1, %s8
    %p112 = scmp.lt.s32.totalorder %s8, 5
    %p113 = pnand %p111, %p112
    %p114 = pneg %p113
    // Predicated region
    $region25: #{_lambda_.7} parent=5 // pred_check
      _
    $region26: #{_lambda_.7} parent=5 // pred_check_branch
      %116 = sbr.rel (%p113) target = $region28
    $region27: #{_lambda_.7} parent=5 // pred_region
      %s117 = ssub.s32 %s8, 1
      %p118 = scmp.lt.s32.totalorder %s13, 3
      %s119 = scalar_select %p118, %s13, 3
      %s120 = smul.addr %s119, 30
      %s121 = smul.addr %s120, 4
      %s122 = scalar_lea.vmem %s0, %s121
      %p123 = pneg %p34
      %p124 = pneg %p31
      %p125 = pneg %p55
      %p126 = pneg %p52
      %p127 = pneg %p81
      %p128 = pneg %p78
      %p129 = scmp.lt.s32.totalorder %s13, 3
      %s130 = scalar_select %p129, %s13, 3
      %s131 = smul.addr %s130, 16
      %s132 = smul.addr %s131, 8
      %s133 = scalar_lea.vmem %s2, %s132
      %p134 = scmp.lt.s32.totalorder %s13, 3
      %s135 = scalar_select %p134, %s13, 3
      %s136 = smul.addr %s135, 30
      %s137 = smul.addr %s136, 4
      %s138 = scalar_lea.vmem %s0, %s137
      %p139 = scmp.lt.s32.totalorder %s13, 3
      %s140 = scalar_select %p139, %s13, 3
      %s141 = smul.addr %s140, 16
      %s142 = smul.addr %s141, 8
      %s143 = scalar_lea.vmem %s2, %s142
      %v145 = vld [vmem:[%s138] sm:$0xf]
      %v146 = vld [vmem:[%s138 + $0x4] sm:$0xf]
      %v147 = vld [vmem:[%s138 + $0x8] sm:$0x1]
      %v148 = vld [vmem:[%s138 + $0xc] sm:$0xf]
      %v149 = vld [vmem:[%s138 + $0x10] sm:$0xf]
      %v150 = vld [vmem:[%s138 + $0x14] sm:$0x1]
      %v151 = vld [vmem:[%s138 + $0x18] sm:$0xf]
      %v152 = vld [vmem:[%s138 + $0x1c] sm:$0xf]
      %v153 = vld [vmem:[%s138 + $0x20] sm:$0x1]
      %v154 = vld [vmem:[%s138 + $0x24] sm:$0xf]
      %v155 = vld [vmem:[%s138 + $0x28] sm:$0xf]
      %v156 = vld [vmem:[%s138 + $0x2c] sm:$0x1]
      %v157 = vld [vmem:[%s138 + $0x30] sm:$0xf]
      %v158 = vld [vmem:[%s138 + $0x34] sm:$0xf]
      %v159 = vld [vmem:[%s138 + $0x38] sm:$0x1]
      %v160 = vld [vmem:[%s138 + $0x3c] sm:$0xf]
      %v161 = vld [vmem:[%s138 + $0x40] sm:$0xf]
      %v162 = vld [vmem:[%s138 + $0x44] sm:$0x1]
      %v163 = vld [vmem:[%s138 + $0x48] sm:$0xf]
      %v164 = vld [vmem:[%s138 + $0x4c] sm:$0xf]
      %v165 = vld [vmem:[%s138 + $0x50] sm:$0x1]
      %v166 = vld [vmem:[%s138 + $0x54] sm:$0xf]
      %v167 = vld [vmem:[%s138 + $0x58] sm:$0xf]
      %v168 = vld [vmem:[%s138 + $0x5c] sm:$0x1]
      %v169 = vld [vmem:[%s138 + $0x60] sm:$0xf]
      %v170 = vld [vmem:[%s138 + $0x64] sm:$0xf]
      %v171 = vld [vmem:[%s138 + $0x68] sm:$0x1]
      %v172 = vld [vmem:[%s138 + $0x6c] sm:$0xf]
      %v173 = vld [vmem:[%s138 + $0x70] sm:$0xf]
      %v174 = vld [vmem:[%s138 + $0x74] sm:$0x1]
      %v191 = vunpack.c.l.b16 %v145
      %v192 = vunpack.c.l.b16 %v146
      %v193 = vunpack.c.l.b16 %v148
      %v194 = vunpack.c.l.b16 %v149
      %v195 = vunpack.c.l.b16 %v151
      %v196 = vunpack.c.l.b16 %v152
      %v197 = vunpack.c.l.b16 %v154
      %v198 = vunpack.c.l.b16 %v155
      %v199 = vunpack.c.l.b16 %v157
      %v200 = vunpack.c.l.b16 %v158
      %v201 = vunpack.c.l.b16 %v160
      %v202 = vunpack.c.l.b16 %v161
      %v203 = vunpack.c.l.b16 %v163
      %v204 = vunpack.c.l.b16 %v164
      %v205 = vunpack.c.l.b16 %v166
      %v206 = vunpack.c.l.b16 %v167
      %v207 = vpack.c.b16 %v192, %v191
      %v208 = vpack.c.b16 %v194, %v193
      %v209 = vpack.c.b16 %v196, %v195
      %v210 = vpack.c.b16 %v198, %v197
      %v211 = vpack.c.b16 %v200, %v199
      %v212 = vpack.c.b16 %v202, %v201
      %v213 = vpack.c.b16 %v204, %v203
      %v214 = vpack.c.b16 %v206, %v205
      %v223 = vunpack.c.l.b16 %v147
      %v224 = vunpack.c.l.b16 %v150
      %v225 = vunpack.c.l.b16 %v153
      %v226 = vunpack.c.l.b16 %v156
      %v227 = vunpack.c.l.b16 %v159
      %v228 = vunpack.c.l.b16 %v162
      %v229 = vunpack.c.l.b16 %v165
      %v230 = vunpack.c.l.b16 %v168
      %v231 = vpack.c.b16 %v223, %v223
      %v232 = vpack.c.b16 %v224, %v224
      %v233 = vpack.c.b16 %v225, %v225
      %v234 = vpack.c.b16 %v226, %v226
      %v235 = vpack.c.b16 %v227, %v227
      %v236 = vpack.c.b16 %v228, %v228
      %v237 = vpack.c.b16 %v229, %v229
      %v238 = vpack.c.b16 %v230, %v230
      %vm239 = vsmask.f32 7424
      %v241 = vshrl.u32 %v207, 16
      %v243 = vshll.u32 %v207, 16
      %v245 = vrot.slane %v243, 1
      %v246 = vor.u32 %v241, %v245
      %v248 = vshll.u32 %v231, 16
      %v250 = vrot.slane %v248, 1
      %v251 = vsel %vm239, %v246, %v250
      %v253 = vshrl.u32 %v208, 16
      %v255 = vshll.u32 %v208, 16
      %v257 = vrot.slane %v255, 1
      %v258 = vor.u32 %v253, %v257
      %v260 = vshll.u32 %v232, 16
      %v262 = vrot.slane %v260, 1
      %v263 = vsel %vm239, %v258, %v262
      %v265 = vshrl.u32 %v209, 16
      %v267 = vshll.u32 %v209, 16
      %v269 = vrot.slane %v267, 1
      %v270 = vor.u32 %v265, %v269
      %v272 = vshll.u32 %v233, 16
      %v274 = vrot.slane %v272, 1
      %v275 = vsel %vm239, %v270, %v274
      %v277 = vshrl.u32 %v210, 16
      %v279 = vshll.u32 %v210, 16
      %v281 = vrot.slane %v279, 1
      %v282 = vor.u32 %v277, %v281
      %v284 = vshll.u32 %v234, 16
      %v286 = vrot.slane %v284, 1
      %v287 = vsel %vm239, %v282, %v286
      %v289 = vshrl.u32 %v211, 16
      %v291 = vshll.u32 %v211, 16
      %v293 = vrot.slane %v291, 1
      %v294 = vor.u32 %v289, %v293
      %v296 = vshll.u32 %v235, 16
      %v298 = vrot.slane %v296, 1
      %v299 = vsel %vm239, %v294, %v298
      %v301 = vshrl.u32 %v212, 16
      %v303 = vshll.u32 %v212, 16
      %v305 = vrot.slane %v303, 1
      %v306 = vor.u32 %v301, %v305
      %v308 = vshll.u32 %v236, 16
      %v310 = vrot.slane %v308, 1
      %v311 = vsel %vm239, %v306, %v310
      %v313 = vshrl.u32 %v213, 16
      %v315 = vshll.u32 %v213, 16
      %v317 = vrot.slane %v315, 1
      %v318 = vor.u32 %v313, %v317
      %v320 = vshll.u32 %v237, 16
      %v322 = vrot.slane %v320, 1
      %v323 = vsel %vm239, %v318, %v322
      %v325 = vshrl.u32 %v214, 16
      %v327 = vshll.u32 %v214, 16
      %v329 = vrot.slane %v327, 1
      %v330 = vor.u32 %v325, %v329
      %v332 = vshll.u32 %v238, 16
      %v334 = vrot.slane %v332, 1
      %v335 = vsel %vm239, %v330, %v334
      %336 = vrot.lane.b32.xlu0 %v251, 32
      %v337 = vpop.permute.xlu0 %336
      %338 = vrot.lane.b32.xlu0 %v263, 32
      %v339 = vpop.permute.xlu0 %338
      %340 = vrot.lane.b32.xlu0 %v275, 32
      %v341 = vpop.permute.xlu0 %340
      %342 = vrot.lane.b32.xlu0 %v287, 32
      %v343 = vpop.permute.xlu0 %342
      %344 = vrot.lane.b32.xlu0 %v299, 32
      %v345 = vpop.permute.xlu0 %344
      %346 = vrot.lane.b32.xlu0 %v311, 32
      %v347 = vpop.permute.xlu0 %346
      %348 = vrot.lane.b32.xlu0 %v323, 32
      %v349 = vpop.permute.xlu0 %348
      %350 = vrot.lane.b32.xlu0 %v335, 32
      %v351 = vpop.permute.xlu0 %350
      %vm352 = vcmask 1046528
      %v353 = vrot.slane %v207, 1
      %v354 = vrot.slane %v231, 1
      %v355 = vsel %vm352, %v353, %v354
      %v356 = vrot.slane %v208, 1
      %v357 = vrot.slane %v232, 1
      %v358 = vsel %vm352, %v356, %v357
      %v359 = vrot.slane %v209, 1
      %v360 = vrot.slane %v233, 1
      %v361 = vsel %vm352, %v359, %v360
      %v362 = vrot.slane %v210, 1
      %v363 = vrot.slane %v234, 1
      %v364 = vsel %vm352, %v362, %v363
      %v365 = vrot.slane %v211, 1
      %v366 = vrot.slane %v235, 1
      %v367 = vsel %vm352, %v365, %v366
      %v368 = vrot.slane %v212, 1
      %v369 = vrot.slane %v236, 1
      %v370 = vsel %vm352, %v368, %v369
      %v371 = vrot.slane %v213, 1
      %v372 = vrot.slane %v237, 1
      %v373 = vsel %vm352, %v371, %v372
      %v374 = vrot.slane %v214, 1
      %v375 = vrot.slane %v238, 1
      %v376 = vsel %vm352, %v374, %v375
      %377 = vrot.lane.b32.xlu0 %v355, 64
      %v378 = vpop.permute.xlu0 %377
      %379 = vrot.lane.b32.xlu0 %v358, 64
      %v380 = vpop.permute.xlu0 %379
      %381 = vrot.lane.b32.xlu0 %v361, 64
      %v382 = vpop.permute.xlu0 %381
      %383 = vrot.lane.b32.xlu0 %v364, 64
      %v384 = vpop.permute.xlu0 %383
      %385 = vrot.lane.b32.xlu0 %v367, 64
      %v386 = vpop.permute.xlu0 %385
      %387 = vrot.lane.b32.xlu0 %v370, 64
      %v388 = vpop.permute.xlu0 %387
      %389 = vrot.lane.b32.xlu0 %v373, 64
      %v390 = vpop.permute.xlu0 %389
      %391 = vrot.lane.b32.xlu0 %v376, 64
      %v392 = vpop.permute.xlu0 %391
      %v395 = vunpack.c.l.b16 %v169
      %v396 = vunpack.c.l.b16 %v170
      %v397 = vpack.c.b16 %v396, %v395
      %398 = vrot.lane.b32.xlu0 %v208, 96
      %v399 = vpop.permute.xlu0 %398
      %400 = vrot.lane.b32.xlu0 %v209, 96
      %v401 = vpop.permute.xlu0 %400
      %402 = vrot.lane.b32.xlu0 %v210, 96
      %v403 = vpop.permute.xlu0 %402
      %404 = vrot.lane.b32.xlu0 %v211, 96
      %v405 = vpop.permute.xlu0 %404
      %406 = vrot.lane.b32.xlu0 %v212, 96
      %v407 = vpop.permute.xlu0 %406
      %408 = vrot.lane.b32.xlu0 %v213, 96
      %v409 = vpop.permute.xlu0 %408
      %410 = vrot.lane.b32.xlu0 %v214, 96
      %v411 = vpop.permute.xlu0 %410
      %412 = vrot.lane.b32.xlu0 %v397, 96
      %v413 = vpop.permute.xlu0 %412
      %v415 = vunpack.c.l.b16 %v171
      %v416 = vpack.c.b16 %v415, %v415
      %v418 = vshrl.u32 %v397, 16
      %v420 = vshll.u32 %v397, 16
      %v422 = vrot.slane %v420, 1
      %v423 = vor.u32 %v418, %v422
      %v425 = vshll.u32 %v416, 16
      %v427 = vrot.slane %v425, 1
      %v428 = vsel %vm239, %v423, %v427
      %v429 = vrot.slane %v397, 1
      %v430 = vrot.slane %v416, 1
      %v431 = vsel %vm352, %v429, %v430
      %432 = vrot.lane.b32.xlu0 %v358, 32
      %v433 = vpop.permute.xlu0 %432
      %434 = vrot.lane.b32.xlu0 %v361, 32
      %v435 = vpop.permute.xlu0 %434
      %436 = vrot.lane.b32.xlu0 %v364, 32
      %v437 = vpop.permute.xlu0 %436
      %438 = vrot.lane.b32.xlu0 %v367, 32
      %v439 = vpop.permute.xlu0 %438
      %440 = vrot.lane.b32.xlu0 %v370, 32
      %v441 = vpop.permute.xlu0 %440
      %442 = vrot.lane.b32.xlu0 %v373, 32
      %v443 = vpop.permute.xlu0 %442
      %444 = vrot.lane.b32.xlu0 %v376, 32
      %v445 = vpop.permute.xlu0 %444
      %446 = vrot.lane.b32.xlu0 %v431, 32
      %v447 = vpop.permute.xlu0 %446
      %v450 = vunpack.c.l.b16 %v172
      %v451 = vunpack.c.l.b16 %v173
      %v452 = vpack.c.b16 %v451, %v450
      %453 = vrot.lane.b32.xlu0 %v209, 64
      %v454 = vpop.permute.xlu0 %453
      %455 = vrot.lane.b32.xlu0 %v210, 64
      %v456 = vpop.permute.xlu0 %455
      %457 = vrot.lane.b32.xlu0 %v211, 64
      %v458 = vpop.permute.xlu0 %457
      %459 = vrot.lane.b32.xlu0 %v212, 64
      %v460 = vpop.permute.xlu0 %459
      %461 = vrot.lane.b32.xlu0 %v213, 64
      %v462 = vpop.permute.xlu0 %461
      %463 = vrot.lane.b32.xlu0 %v214, 64
      %v464 = vpop.permute.xlu0 %463
      %465 = vrot.lane.b32.xlu0 %v397, 64
      %v466 = vpop.permute.xlu0 %465
      %467 = vrot.lane.b32.xlu0 %v452, 64
      %v468 = vpop.permute.xlu0 %467
      %v470 = vunpack.c.l.b16 %v174
      %v471 = vpack.c.b16 %v470, %v470
      %v473 = vshrl.u32 %v452, 16
      %v475 = vshll.u32 %v452, 16
      %v477 = vrot.slane %v475, 1
      %v478 = vor.u32 %v473, %v477
      %v480 = vshll.u32 %v471, 16
      %v482 = vrot.slane %v480, 1
      %v483 = vsel %vm239, %v478, %v482
      %484 = vrot.lane.b32.xlu0 %v275, 96
      %v485 = vpop.permute.xlu0 %484
      %486 = vrot.lane.b32.xlu0 %v287, 96
      %v487 = vpop.permute.xlu0 %486
      %488 = vrot.lane.b32.xlu0 %v299, 96
      %v489 = vpop.permute.xlu0 %488
      %490 = vrot.lane.b32.xlu0 %v311, 96
      %v491 = vpop.permute.xlu0 %490
      %492 = vrot.lane.b32.xlu0 %v323, 96
      %v493 = vpop.permute.xlu0 %492
      %494 = vrot.lane.b32.xlu0 %v335, 96
      %v495 = vpop.permute.xlu0 %494
      %496 = vrot.lane.b32.xlu0 %v428, 96
      %v497 = vpop.permute.xlu0 %496
      %498 = vrot.lane.b32.xlu0 %v483, 96
      %v499 = vpop.permute.xlu0 %498
      %v500 = vrot.slane %v452, 1
      %v501 = vrot.slane %v471, 1
      %v502 = vsel %vm352, %v500, %v501
      %vm503 = vcmask 261120
      %v505 = vsel %vm503, %v207, %v337
      %v507 = vsel %vm503, %v208, %v339
      %v509 = vsel %vm503, %v209, %v341
      %v511 = vsel %vm503, %v210, %v343
      %v513 = vsel %vm503, %v211, %v345
      %v515 = vsel %vm503, %v212, %v347
      %v517 = vsel %vm503, %v213, %v349
      %v519 = vsel %vm503, %v214, %v351
      %vm520 = vcmask 523264
      %v522 = vsel %vm520, %v505, %v378
      %v524 = vsel %vm520, %v507, %v380
      %v526 = vsel %vm520, %v509, %v382
      %v528 = vsel %vm520, %v511, %v384
      %v530 = vsel %vm520, %v513, %v386
      %v532 = vsel %vm520, %v515, %v388
      %v534 = vsel %vm520, %v517, %v390
      %v536 = vsel %vm520, %v519, %v392
      %vm537 = vcmask 785408
      %v539 = vsel %vm537, %v522, %v399
      %v542 = vsel %vm537, %v524, %v401
      %v545 = vsel %vm537, %v526, %v403
      %v548 = vsel %vm537, %v528, %v405
      %v551 = vsel %vm537, %v530, %v407
      %v554 = vsel %vm537, %v532, %v409
      %v557 = vsel %vm537, %v534, %v411
      %v560 = vsel %vm537, %v536, %v413
      %v564 = vsel %vm503, %v263, %v433
      %v567 = vsel %vm503, %v275, %v435
      %v570 = vsel %vm503, %v287, %v437
      %v573 = vsel %vm503, %v299, %v439
      %v576 = vsel %vm503, %v311, %v441
      %v579 = vsel %vm503, %v323, %v443
      %v582 = vsel %vm503, %v335, %v445
      %v585 = vsel %vm503, %v428, %v447
      %v587 = vsel %vm520, %v564, %v454
      %v589 = vsel %vm520, %v567, %v456
      %v591 = vsel %vm520, %v570, %v458
      %v593 = vsel %vm520, %v573, %v460
      %v595 = vsel %vm520, %v576, %v462
      %v597 = vsel %vm520, %v579, %v464
      %v599 = vsel %vm520, %v582, %v466
      %v601 = vsel %vm520, %v585, %v468
      %v603 = vsel %vm537, %v587, %v485
      %v606 = vsel %vm537, %v589, %v487
      %v609 = vsel %vm537, %v591, %v489
      %v612 = vsel %vm537, %v593, %v491
      %v615 = vsel %vm537, %v595, %v493
      %v618 = vsel %vm537, %v597, %v495
      %v621 = vsel %vm537, %v599, %v497
      %v624 = vsel %vm537, %v601, %v499
      %v626 = vld [vmem:[%s1] sm:$0xf]
      %v627 = vld [vmem:[%s1 + $0x4] sm:$0xf]
      %v628 = vld [vmem:[%s1 + $0x8] sm:$0xf]
      %v629 = vld [vmem:[%s1 + $0xc] sm:$0xf]
      %v630 = vld [vmem:[%s1 + $0x10] sm:$0xf]
      %v631 = vld [vmem:[%s1 + $0x14] sm:$0xf]
      %v632 = vld [vmem:[%s1 + $0x18] sm:$0xf]
      %v633 = vld [vmem:[%s1 + $0x1c] sm:$0xf]
      %v634 = vld [vmem:[%s1 + $0x20] sm:$0xf]
      %v635 = vld [vmem:[%s1 + $0x24] sm:$0xf]
      %v636 = vld [vmem:[%s1 + $0x28] sm:$0xf]
      %v637 = vld [vmem:[%s1 + $0x2c] sm:$0xf]
      %v638 = vld [vmem:[%s1 + $0x30] sm:$0xf]
      %v639 = vld [vmem:[%s1 + $0x34] sm:$0xf]
      %v640 = vld [vmem:[%s1 + $0x38] sm:$0xf]
      %v641 = vld [vmem:[%s1 + $0x3c] sm:$0xf]
      %v642 = vld [vmem:[%s1 + $0x40] sm:$0xf]
      %v643 = vld [vmem:[%s1 + $0x44] sm:$0xf]
      %v644 = vld [vmem:[%s1 + $0x48] sm:$0xf]
      %v645 = vld [vmem:[%s1 + $0x4c] sm:$0xf]
      %v646 = vld [vmem:[%s1 + $0x50] sm:$0xf]
      %v647 = vld [vmem:[%s1 + $0x54] sm:$0xf]
      %v648 = vld [vmem:[%s1 + $0x58] sm:$0xf]
      %v649 = vld [vmem:[%s1 + $0x5c] sm:$0xf]
      %v650 = vld [vmem:[%s1 + $0x60] sm:$0xf]
      %v651 = vld [vmem:[%s1 + $0x64] sm:$0xf]
      %v652 = vld [vmem:[%s1 + $0x68] sm:$0xf]
      %v653 = vld [vmem:[%s1 + $0x6c] sm:$0xf]
      %v654 = vld [vmem:[%s1 + $0x70] sm:$0xf]
      %v655 = vld [vmem:[%s1 + $0x74] sm:$0xf]
      %v656 = vld [vmem:[%s1 + $0x78] sm:$0xf]
      %v657 = vld [vmem:[%s1 + $0x7c] sm:$0xf]
      %v658 = vld [vmem:[%s1 + $0x80] sm:$0xf]
      %v659 = vld [vmem:[%s1 + $0x84] sm:$0xf]
      %v660 = vld [vmem:[%s1 + $0x88] sm:$0xf]
      %v661 = vld [vmem:[%s1 + $0x8c] sm:$0xf]
      %v698 = vunpack.c.l.b16 %v626
      %v699 = vunpack.c.l.b16 %v627
      %v700 = vunpack.c.l.b16 %v628
      %v701 = vunpack.c.l.b16 %v629
      %v702 = vunpack.c.l.b16 %v630
      %v703 = vunpack.c.l.b16 %v631
      %v704 = vunpack.c.l.b16 %v632
      %v705 = vunpack.c.l.b16 %v633
      %v706 = vunpack.c.l.b16 %v634
      %v707 = vunpack.c.l.b16 %v635
      %v708 = vunpack.c.l.b16 %v636
      %v709 = vunpack.c.l.b16 %v637
      %v710 = vunpack.c.l.b16 %v638
      %v711 = vunpack.c.l.b16 %v639
      %v712 = vunpack.c.l.b16 %v640
      %v713 = vunpack.c.l.b16 %v641
      %v714 = vunpack.c.l.b16 %v642
      %v715 = vunpack.c.l.b16 %v643
      %v716 = vunpack.c.l.b16 %v644
      %v717 = vunpack.c.l.b16 %v645
      %v718 = vunpack.c.l.b16 %v646
      %v719 = vunpack.c.l.b16 %v647
      %v720 = vunpack.c.l.b16 %v648
      %v721 = vunpack.c.l.b16 %v649
      %v722 = vunpack.c.l.b16 %v650
      %v723 = vunpack.c.l.b16 %v651
      %v724 = vunpack.c.l.b16 %v652
      %v725 = vunpack.c.l.b16 %v653
      %v726 = vunpack.c.l.b16 %v654
      %v727 = vunpack.c.l.b16 %v655
      %v728 = vunpack.c.l.b16 %v656
      %v729 = vunpack.c.l.b16 %v657
      %v730 = vunpack.c.l.b16 %v658
      %v731 = vunpack.c.l.b16 %v659
      %v732 = vunpack.c.l.b16 %v660
      %v733 = vunpack.c.l.b16 %v661
      %v734 = vpack.c.b16 %v699, %v698
      %v735 = vpack.c.b16 %v701, %v700
      %v736 = vpack.c.b16 %v703, %v702
      %v737 = vpack.c.b16 %v705, %v704
      %v738 = vpack.c.b16 %v707, %v706
      %v739 = vpack.c.b16 %v709, %v708
      %v740 = vpack.c.b16 %v711, %v710
      %v741 = vpack.c.b16 %v713, %v712
      %v742 = vpack.c.b16 %v715, %v714
      %v743 = vpack.c.b16 %v717, %v716
      %v744 = vpack.c.b16 %v719, %v718
      %v745 = vpack.c.b16 %v721, %v720
      %v746 = vpack.c.b16 %v723, %v722
      %v747 = vpack.c.b16 %v725, %v724
      %v748 = vpack.c.b16 %v727, %v726
      %v749 = vpack.c.b16 %v729, %v728
      %v750 = vpack.c.b16 %v731, %v730
      %v751 = vpack.c.b16 %v733, %v732
      %v771 = vsel %vm503, %v361, 0
      %v774 = vsel %vm503, %v364, 0
      %v777 = vsel %vm503, %v367, 0
      %v780 = vsel %vm503, %v370, 0
      %v783 = vsel %vm503, %v373, 0
      %v786 = vsel %vm503, %v376, 0
      %v789 = vsel %vm503, %v431, 0
      %v792 = vsel %vm503, %v502, 0
      %794 = vmatpush.bf16.msra.mxu0 %v741
      %795 = vmatpush.bf16.msra.mxu0 %v740
      %796 = vmatpush.bf16.msra.mxu0 %v739
      %797 = vmatpush.bf16.msra.mxu0 %v738
      %798 = vmatpush.bf16.msra.mxu0 %v737
      %799 = vmatpush.bf16.msra.mxu0 %v736
      %800 = vmatpush.bf16.msra.mxu0 %v735
      %801 = vmatpush.bf16.msra.mxu0 %v734
      %802 = vmatmul.bf16.gmra.mxu0 %v539
      %v803 = vpop.f32.mrf.mxu0
      %v804 = vadd.f32 0.0, %v803
      %v805 = vpop.f32.mrf.mxu0
      %v806 = vadd.f32 0.0, %v805
      %807 = vmatmul.bf16.gmra.mxu0 %v542
      %v808 = vpop.f32.mrf.mxu0
      %v809 = vadd.f32 0.0, %v808
      %v810 = vpop.f32.mrf.mxu0
      %v811 = vadd.f32 0.0, %v810
      %812 = vmatmul.bf16.gmra.mxu0 %v545
      %v813 = vpop.f32.mrf.mxu0
      %v814 = vadd.f32 0.0, %v813
      %v815 = vpop.f32.mrf.mxu0
      %v816 = vadd.f32 0.0, %v815
      %817 = vmatmul.bf16.gmra.mxu0 %v548
      %v818 = vpop.f32.mrf.mxu0
      %v819 = vadd.f32 0.0, %v818
      %v820 = vpop.f32.mrf.mxu0
      %v821 = vadd.f32 0.0, %v820
      %822 = vmatmul.bf16.gmra.mxu0 %v551
      %v823 = vpop.f32.mrf.mxu0
      %v824 = vadd.f32 0.0, %v823
      %v825 = vpop.f32.mrf.mxu0
      %v826 = vadd.f32 0.0, %v825
      %827 = vmatmul.bf16.gmra.mxu0 %v554
      %v828 = vpop.f32.mrf.mxu0
      %v829 = vadd.f32 0.0, %v828
      %v830 = vpop.f32.mrf.mxu0
      %v831 = vadd.f32 0.0, %v830
      %832 = vmatmul.bf16.gmra.mxu0 %v557
      %v833 = vpop.f32.mrf.mxu0
      %v834 = vadd.f32 0.0, %v833
      %v835 = vpop.f32.mrf.mxu0
      %v836 = vadd.f32 0.0, %v835
      %837 = vmatmul.bf16.gmra.mxu0 %v560
      %v838 = vpop.f32.mrf.mxu0
      %v839 = vadd.f32 0.0, %v838
      %v840 = vpop.f32.mrf.mxu0
      %v841 = vadd.f32 0.0, %v840
      %842 = vdwg.mxu0
      %843 = vmatpush.bf16.msra.mxu0 %v749
      %844 = vmatpush.bf16.msra.mxu0 %v748
      %845 = vmatpush.bf16.msra.mxu0 %v747
      %846 = vmatpush.bf16.msra.mxu0 %v746
      %847 = vmatpush.bf16.msra.mxu0 %v745
      %848 = vmatpush.bf16.msra.mxu0 %v744
      %849 = vmatpush.bf16.msra.mxu0 %v743
      %850 = vmatpush.bf16.msra.mxu0 %v742
      %851 = vmatmul.bf16.gmra.mxu0 %v603
      %v852 = vpop.f32.mrf.mxu0
      %v853 = vadd.f32 %v804, %v852
      %v854 = vpop.f32.mrf.mxu0
      %v855 = vadd.f32 %v806, %v854
      %856 = vmatmul.bf16.gmra.mxu0 %v606
      %v857 = vpop.f32.mrf.mxu0
      %v858 = vadd.f32 %v809, %v857
      %v859 = vpop.f32.mrf.mxu0
      %v860 = vadd.f32 %v811, %v859
      %861 = vmatmul.bf16.gmra.mxu0 %v609
      %v862 = vpop.f32.mrf.mxu0
      %v863 = vadd.f32 %v814, %v862
      %v864 = vpop.f32.mrf.mxu0
      %v865 = vadd.f32 %v816, %v864
      %866 = vmatmul.bf16.gmra.mxu0 %v612
      %v867 = vpop.f32.mrf.mxu0
      %v868 = vadd.f32 %v819, %v867
      %v869 = vpop.f32.mrf.mxu0
      %v870 = vadd.f32 %v821, %v869
      %871 = vmatmul.bf16.gmra.mxu0 %v615
      %v872 = vpop.f32.mrf.mxu0
      %v873 = vadd.f32 %v824, %v872
      %v874 = vpop.f32.mrf.mxu0
      %v875 = vadd.f32 %v826, %v874
      %876 = vmatmul.bf16.gmra.mxu0 %v618
      %v877 = vpop.f32.mrf.mxu0
      %v878 = vadd.f32 %v829, %v877
      %v879 = vpop.f32.mrf.mxu0
      %v880 = vadd.f32 %v831, %v879
      %881 = vmatmul.bf16.gmra.mxu0 %v621
      %v882 = vpop.f32.mrf.mxu0
      %v883 = vadd.f32 %v834, %v882
      %v884 = vpop.f32.mrf.mxu0
      %v885 = vadd.f32 %v836, %v884
      %886 = vmatmul.bf16.gmra.mxu0 %v624
      %v887 = vpop.f32.mrf.mxu0
      %v888 = vadd.f32 %v839, %v887
      %v889 = vpop.f32.mrf.mxu0
      %v890 = vadd.f32 %v841, %v889
      %891 = vdwg.mxu0
      %892 = vmatpush.bf16.msra.mxu0 0
      %893 = vmatpush.bf16.msra.mxu0 0
      %894 = vmatpush.bf16.msra.mxu0 0
      %895 = vmatpush.bf16.msra.mxu0 0
      %896 = vmatpush.bf16.msra.mxu0 0
      %897 = vmatpush.bf16.msra.mxu0 0
      %898 = vmatpush.bf16.msra.mxu0 %v751
      %899 = vmatpush.bf16.msra.mxu0 %v750
      %900 = vmatmul.bf16.gmra.mxu0 %v771
      %v901 = vpop.f32.mrf.mxu0
      %v902 = vadd.f32 %v853, %v901
      %v903 = vpop.f32.mrf.mxu0
      %v904 = vadd.f32 %v855, %v903
      %905 = vmatmul.bf16.gmra.mxu0 %v774
      %v906 = vpop.f32.mrf.mxu0
      %v907 = vadd.f32 %v858, %v906
      %v908 = vpop.f32.mrf.mxu0
      %v909 = vadd.f32 %v860, %v908
      %910 = vmatmul.bf16.gmra.mxu0 %v777
      %v911 = vpop.f32.mrf.mxu0
      %v912 = vadd.f32 %v863, %v911
      %v913 = vpop.f32.mrf.mxu0
      %v914 = vadd.f32 %v865, %v913
      %915 = vmatmul.bf16.gmra.mxu0 %v780
      %v916 = vpop.f32.mrf.mxu0
      %v917 = vadd.f32 %v868, %v916
      %v918 = vpop.f32.mrf.mxu0
      %v919 = vadd.f32 %v870, %v918
      %920 = vmatmul.bf16.gmra.mxu0 %v783
      %v921 = vpop.f32.mrf.mxu0
      %v922 = vadd.f32 %v873, %v921
      %v923 = vpop.f32.mrf.mxu0
      %v924 = vadd.f32 %v875, %v923
      %925 = vmatmul.bf16.gmra.mxu0 %v786
      %v926 = vpop.f32.mrf.mxu0
      %v927 = vadd.f32 %v878, %v926
      %v928 = vpop.f32.mrf.mxu0
      %v929 = vadd.f32 %v880, %v928
      %930 = vmatmul.bf16.gmra.mxu0 %v789
      %v931 = vpop.f32.mrf.mxu0
      %v932 = vadd.f32 %v883, %v931
      %v933 = vpop.f32.mrf.mxu0
      %v934 = vadd.f32 %v885, %v933
      %935 = vmatmul.bf16.gmra.mxu0 %v792
      %v936 = vpop.f32.mrf.mxu0
      %v937 = vadd.f32 %v888, %v936
      %v938 = vpop.f32.mrf.mxu0
      %v939 = vadd.f32 %v890, %v938
      %940 = vdwg.mxu0
      %vm941 = vcmask 31744
      %942 = vst.msk [vmem:[%s143] sm:$0xff] %vm941, %v902
      %943 = vst.msk [vmem:[%s143 + $0x8] sm:$0xff] %vm941, %v904
      %944 = vst.msk [vmem:[%s143 + $0x10] sm:$0xff] %vm941, %v907
      %945 = vst.msk [vmem:[%s143 + $0x18] sm:$0xff] %vm941, %v909
      %946 = vst.msk [vmem:[%s143 + $0x20] sm:$0xff] %vm941, %v912
      %947 = vst.msk [vmem:[%s143 + $0x28] sm:$0xff] %vm941, %v914
      %948 = vst.msk [vmem:[%s143 + $0x30] sm:$0xff] %vm941, %v917
      %949 = vst.msk [vmem:[%s143 + $0x38] sm:$0xff] %vm941, %v919
      %950 = vst.msk [vmem:[%s143 + $0x40] sm:$0xff] %vm941, %v922
      %951 = vst.msk [vmem:[%s143 + $0x48] sm:$0xff] %vm941, %v924
      %952 = vst.msk [vmem:[%s143 + $0x50] sm:$0xff] %vm941, %v927
      %953 = vst.msk [vmem:[%s143 + $0x58] sm:$0xff] %vm941, %v929
      %954 = vst.msk [vmem:[%s143 + $0x60] sm:$0xff] %vm941, %v932
      %955 = vst.msk [vmem:[%s143 + $0x68] sm:$0xff] %vm941, %v934
      %956 = vst.msk [vmem:[%s143 + $0x70] sm:$0xff] %vm941, %v937
      %957 = vst.msk [vmem:[%s143 + $0x78] sm:$0xff] %vm941, %v939
      %p958 = scmp.lt.s32.totalorder %s13, 3
      %s959 = scalar_select %p958, %s13, 3
      %s960 = smul.addr %s959, 16
      %s961 = smul.addr %s960, 8
      %s962 = scalar_lea.vmem %s2, %s961
      // Predicated region
      $region29: #{_lambda_.7} parent=27 // pred_check
        %p963 = pneg %p78
      $region30: #{_lambda_.7} parent=27 // pred_check_branch
        %965 = sbr.rel (%p963) target = $region32
      $region31: #{_lambda_.7} parent=27 // pred_region
        _
      $region32: #{_lambda_.7} parent=27 // pred_fallthru
        _
    $region28: #{_lambda_.7} parent=5 // pred_fallthru
      _
    %p966 = scmp.le.s32.totalorder 2, %s8
    // Predicated region
    $region33: #{_lambda_.7} parent=5 // pred_check
      %p967 = pneg %p966
    $region34: #{_lambda_.7} parent=5 // pred_check_branch
      %969 = sbr.rel (%p967) target = $region36
    $region35: #{_lambda_.7} parent=5 // pred_region
      %s970 = ssub.s32 %s8, 2
      // Predicated region
      $region37: #{_lambda_.7} parent=35 // pred_check
        %p971 = pneg %p84
      $region38: #{_lambda_.7} parent=35 // pred_check_branch
        %973 = sbr.rel (%p971) target = $region40
      $region39: #{_lambda_.7} parent=35 // pred_region
        %p974 = scmp.lt.s32.totalorder %s14, 3
        %s975 = scalar_select %p974, %s14, 3
        %s976 = smul.addr %s975, 16
        %s977 = smul.addr %s976, 8
        %s978 = scalar_lea.vmem %s2, %s977
      $region40: #{_lambda_.7} parent=35 // pred_fallthru
        _
    $region36: #{_lambda_.7} parent=5 // pred_fallthru
      _
  $region6: #{_lambda_.7} parent=0 // loop_footer
    %s12 = sadd.s32 1, %s8
  $region7: #{_lambda_.7} parent=0 // loop_footer_branch
    %7 = sbr.rel target = $region3
  $region8: #{_lambda_.7} parent=0 // loop_exit
    _

</llo_original>
